<compile_context>
chip_gen: v5e
topology: v5e:2x2
jax: 0.10.0
libtpu: 0.0.40
codegen_flags: <defaults>
</compile_context>

<pallas_src>
import functools

import jax
import jax.numpy as jnp
import numpy as np
from jax.experimental import pallas as pl
from jax.experimental.pallas import tpu as pltpu

EPS = 1e-5
NEG_SLOPE = 0.01
_SUB = 8  # sublane quantum


def _round_up(x, m):
    return (x + m - 1) // m * m


# ----------------------------------------------------------------------------
# Glue helpers (pure data layout, run once per call)
# ----------------------------------------------------------------------------
def _boundary_masks(D, H, W):
    """(27, S) f32 mask; row k (k = kd*9+kh*3+kw) is 1 where the neighbour at
    offset (kd-1, kh-1, kw-1) lies inside the volume (i.e. not zero padding)."""
    d = np.arange(D)[:, None, None]
    h = np.arange(H)[None, :, None]
    w = np.arange(W)[None, None, :]
    rows = []
    for kd in (-1, 0, 1):
        for kh in (-1, 0, 1):
            for kw in (-1, 0, 1):
                ok = ((d + kd >= 0) & (d + kd < D) &
                      (h + kh >= 0) & (h + kh < H) &
                      (w + kw >= 0) & (w + kw < W))
                rows.append(np.broadcast_to(ok, (D, H, W)).reshape(-1))
    return jnp.asarray(np.stack(rows, axis=0), dtype=jnp.float32)


def _pack_conv3_weight(w, cin_p, cout_p):
    """(Cout, Cin, 3,3,3) -> (cout_p, 27*cin_p) with K index = off*cin_p + ci,
    off = kd*9 + kh*3 + kw (matches the in-kernel im2col row ordering)."""
    cout, cin = w.shape[:2]
    wt = jnp.transpose(w, (0, 2, 3, 4, 1))           # (Cout, 3, 3, 3, Cin)
    wp = jnp.zeros((cout_p, 3, 3, 3, cin_p), w.dtype)
    wp = wp.at[:cout, :, :, :, :cin].set(wt)
    return wp.reshape(cout_p, 27 * cin_p)


def _pad2(a, rows, cols):
    out = jnp.zeros((rows, cols), a.dtype)
    return out.at[:a.shape[0], :a.shape[1]].set(a)


# ----------------------------------------------------------------------------
# Fused kernel: conv3 -> IN -> LeakyReLU -> conv3 -> IN, +1x1 shortcut, LeakyReLU
# ----------------------------------------------------------------------------
def _res_conv_block_kernel(mask_ref, x_ref, w1_ref, b1_ref, w2_ref, b2_ref,
                           wsc_ref, bsc_ref, o_ref, *, dhw):
    D, H, W = dhw
    S = D * H * W
    inv_s = 1.0 / S

    x = x_ref[0]                 # (Cin_p, S)  f32
    masks = mask_ref[...]        # (27, S)     f32 in {0, 1}

    # Static flat-index offsets of the 27 taps (same order as masks / weights).
    offsets = [kd * H * W + kh * W + kw
               for kd in (-1, 0, 1) for kh in (-1, 0, 1) for kw in (-1, 0, 1)]

    def im2col(a):
        # a: (C, S) -> (27*C, S).  roll brings the neighbour at flat offset
        # `off` onto the output voxel's lane; the mask zeroes lanes whose
        # neighbour lies in the zero padding (or wrapped around).
        blocks = []
        for i, off in enumerate(offsets):
            if off == 0:
                blocks.append(a)
            else:
                shifted = pltpu.roll(a, shift=(-off) % S, axis=1)
                blocks.append(shifted * masks[i:i + 1])
        return jnp.concatenate(blocks, axis=0)

    def instance_norm(y):
        # single-pass biased mean/var over the full spatial extent (lane axis)
        mean = jnp.sum(y, axis=-1, keepdims=True) * inv_s
        var = jnp.sum(y * y, axis=-1, keepdims=True) * inv_s - mean * mean
        return (y - mean) * jax.lax.rsqrt(jnp.maximum(var, 0.0) + EPS)

    def leaky_relu(y):
        return jnp.where(y >= 0, y, NEG_SLOPE * y)

    # conv1 (3x3x3, pad 1) + InstanceNorm + LeakyReLU   (a1 stays in VMEM)
    y1 = jnp.dot(w1_ref[...], im2col(x),
                 preferred_element_type=jnp.float32) + b1_ref[...]
    a1 = leaky_relu(instance_norm(y1))

    # conv2 (3x3x3, pad 1) + InstanceNorm
    y2 = jnp.dot(w2_ref[...], im2col(a1),
                 preferred_element_type=jnp.float32) + b2_ref[...]
    y2 = instance_norm(y2)

    # shortcut 1x1x1 conv + residual add + LeakyReLU
    ysc = jnp.dot(wsc_ref[...], x,
                  preferred_element_type=jnp.float32) + bsc_ref[...]
    o_ref[0] = leaky_relu(y2 + ysc)


# ----------------------------------------------------------------------------
# Wrapper
# ----------------------------------------------------------------------------
def res_conv_block(x, params):
    """x: (N, Cin, D, H, W) f32, params as in nn.Conv3d. Returns NCDHW f32."""
    w1, b1, w2, b2, wsc, bsc = params
    N, Cin, D, H, W = x.shape
    Cout = w1.shape[0]
    S = D * H * W

    cin_p = _round_up(Cin, _SUB)
    cout_p = _round_up(Cout, _SUB)

    # --- layout glue: flatten spatial dims, zero-pad channels to sublanes ---
    x_flat = jnp.zeros((N, cin_p, S), x.dtype).at[:, :Cin, :].set(
        x.reshape(N, Cin, S))
    w1f = _pack_conv3_weight(w1, cin_p, cout_p)        # (cout_p, 27*cin_p)
    w2f = _pack_conv3_weight(w2, cout_p, cout_p)       # (cout_p, 27*cout_p)
    wscf = _pad2(wsc.reshape(Cout, Cin), cout_p, cin_p)
    b1c = _pad2(b1.reshape(Cout, 1), cout_p, 1)
    b2c = _pad2(b2.reshape(Cout, 1), cout_p, 1)
    bscc = _pad2(bsc.reshape(Cout, 1), cout_p, 1)
    masks = _boundary_masks(D, H, W)                   # (27, S)

    # --- scheduling hints ----------------------------------------------------
    flops = 2 * N * cout_p * S * (27 * cin_p + 27 * cout_p + cin_p)
    bytes_accessed = 4 * (x_flat.size + N * cout_p * S + w1f.size + w2f.size
                          + wscf.size + 3 * cout_p + masks.size)
    cost = pl.CostEstimate(flops=flops,
                           transcendentals=2 * N * cout_p,
                           bytes_accessed=bytes_accessed)

    per_step_f32 = (2 * cin_p * S + 2 * cout_p * S + 2 * 27 * S   # pipelined blocks
                    + 27 * cin_p * S + 27 * cout_p * S            # im2col values
                    + 8 * cout_p * S)                             # misc temporaries
    vmem_bytes = int(min(max(4 * per_step_f32 * 3 // 2, 32 * 1024 * 1024),
                         64 * 1024 * 1024))
    # TODO(synk): for volumes where 27*cout_p*S*4 approaches the VMEM budget
    # (v7x: 64 MiB), add a D-tiled grid axis with 1-voxel halos and a
    # cross-tile (two-pass) instance norm instead of a whole-volume tile;
    # with N == 1 that extra axis should also be "parallel" so both v7x
    # TensorCores are used.

    kernel = functools.partial(_res_conv_block_kernel, dhw=(D, H, W))
    out = pl.pallas_call(
        kernel,
        out_shape=jax.ShapeDtypeStruct((N, cout_p, S), jnp.float32),
        grid=(N,),
        in_specs=[
            pl.BlockSpec((27, S), lambda n: (0, 0)),                 # masks
            pl.BlockSpec((1, cin_p, S), lambda n: (n, 0, 0)),        # x
            pl.BlockSpec((cout_p, 27 * cin_p), lambda n: (0, 0)),    # w1
            pl.BlockSpec((cout_p, 1), lambda n: (0, 0)),             # b1
            pl.BlockSpec((cout_p, 27 * cout_p), lambda n: (0, 0)),   # w2
            pl.BlockSpec((cout_p, 1), lambda n: (0, 0)),             # b2
            pl.BlockSpec((cout_p, cin_p), lambda n: (0, 0)),         # wsc
            pl.BlockSpec((cout_p, 1), lambda n: (0, 0)),             # bsc
        ],
        out_specs=pl.BlockSpec((1, cout_p, S), lambda n: (n, 0, 0)),
        compiler_params=pltpu.CompilerParams(
            dimension_semantics=("parallel",),
            vmem_limit_bytes=vmem_bytes),
        cost_estimate=cost,
    )(masks, x_flat, w1f, b1c, w2f, b2c, wscf, bscc)

    return out[:, :Cout, :].reshape(N, Cout, D, H, W)


# ----------------------------------------------------------------------------
# Pure-JAX reference for verification
# ----------------------------------------------------------------------------
def ref_res_conv_block(x, params):
    w1, b1, w2, b2, wsc, bsc = params
    dn = ("NCDHW", "OIDHW", "NCDHW")

    def conv(x, w, b, pad):
        y = jax.lax.conv_general_dilated(
            x, w, window_strides=(1, 1, 1), padding=[(pad, pad)] * 3,
            dimension_numbers=dn)
        return y + b.reshape(1, -1, 1, 1, 1)

    def inorm(y):
        m = y.mean(axis=(2, 3, 4), keepdims=True)
        v = ((y - m) ** 2).mean(axis=(2, 3, 4), keepdims=True)
        return (y - m) / jnp.sqrt(v + EPS)

    def lrelu(y):
        return jnp.where(y >= 0, y, NEG_SLOPE * y)

    y = conv(x, w1, b1, 1)
    y = lrelu(inorm(y))
    y = conv(y, w2, b2, 1)
    y = inorm(y)
    sc = conv(x, wsc, bsc, 0)
    return lrelu(y + sc)


# ----------------------------------------------------------------------------
if __name__ == "__main__":
    N, Cin, Cout, D, H, W = 2, 4, 8, 8, 8, 8

    key = jax.random.PRNGKey(0)
    kx, k1, k2, k3, k4, k5, k6 = jax.random.split(key, 7)

    x = jax.random.normal(kx, (N, Cin, D, H, W), jnp.float32)

    # Deterministic synthetic parameters (shapes follow nn.Conv3d in __init__).
    w1 = jax.random.normal(k1, (Cout, Cin, 3, 3, 3), jnp.float32) * 0.1
    b1 = jax.random.normal(k2, (Cout,), jnp.float32) * 0.1
    w2 = jax.random.normal(k3, (Cout, Cout, 3, 3, 3), jnp.float32) * 0.1
    b2 = jax.random.normal(k4, (Cout,), jnp.float32) * 0.1
    wsc = jax.random.normal(k5, (Cout, Cin, 1, 1, 1), jnp.float32) * 0.1
    bsc = jax.random.normal(k6, (Cout,), jnp.float32) * 0.1
    params = (w1, b1, w2, b2, wsc, bsc)

    out = jax.jit(res_conv_block)(x, params)
    out = jax.block_until_ready(out)

    ref = ref_res_conv_block(x, params)
    assert out.shape == (N, Cout, D, H, W)
    # Kernel matmuls run at default MXU precision (bf16 operand rounding, f32
    # accumulation) instead of f32 HIGHEST -> compare with a loosened tolerance.
    max_err = float(jnp.max(jnp.abs(out - ref)))
    assert jnp.allclose(out, ref, rtol=2e-2, atol=5e-2), max_err

    print("KERNEL_OK")
</pallas_src>

<mosaic_0001>
module attributes {stable_mosaic.version = 11 : i64} {
  func.func @_res_conv_block_kernel(%arg0: i32, %arg1: memref<27x512xf32, #tpu.memory_space<vmem>>, %arg2: memref<1x8x512xf32, #tpu.memory_space<vmem>>, %arg3: memref<8x216xf32, #tpu.memory_space<vmem>>, %arg4: memref<8x1xf32, #tpu.memory_space<vmem>>, %arg5: memref<8x216xf32, #tpu.memory_space<vmem>>, %arg6: memref<8x1xf32, #tpu.memory_space<vmem>>, %arg7: memref<8x8xf32, #tpu.memory_space<vmem>>, %arg8: memref<8x1xf32, #tpu.memory_space<vmem>>, %arg9: memref<1x8x512xf32, #tpu.memory_space<vmem>>) attributes {dimension_semantics = [#tpu.dimension_semantics<parallel>], iteration_bounds = array<i64: 2>, scalar_prefetch = 0 : i64, scratch_operands = 0 : i64, tpu.core_type = #tpu.core_type<tc>, window_params = [{pipeline_mode = #tpu.pipeline_mode<synchronous>, transform_indices = @transform_0, window_bounds = array<i64: 27, 512>}, {transform_indices = @transform_1, window_bounds = array<i64: 1, 8, 512>}, {pipeline_mode = #tpu.pipeline_mode<synchronous>, transform_indices = @transform_2, window_bounds = array<i64: 8, 216>}, {pipeline_mode = #tpu.pipeline_mode<synchronous>, transform_indices = @transform_3, window_bounds = array<i64: 8, 1>}, {pipeline_mode = #tpu.pipeline_mode<synchronous>, transform_indices = @transform_4, window_bounds = array<i64: 8, 216>}, {pipeline_mode = #tpu.pipeline_mode<synchronous>, transform_indices = @transform_5, window_bounds = array<i64: 8, 1>}, {pipeline_mode = #tpu.pipeline_mode<synchronous>, transform_indices = @transform_6, window_bounds = array<i64: 8, 8>}, {pipeline_mode = #tpu.pipeline_mode<synchronous>, transform_indices = @transform_7, window_bounds = array<i64: 8, 1>}, {transform_indices = @transform_8, window_bounds = array<i64: 1, 8, 512>}]} {
    %c0 = arith.constant 0 : index
    %c0_0 = arith.constant 0 : index
    %c0_1 = arith.constant 0 : index
    %0 = vector.load %arg2[%c0, %c0_0, %c0_1] : memref<1x8x512xf32, #tpu.memory_space<vmem>>, vector<1x8x512xf32>
    %1 = vector.shape_cast %0 : vector<1x8x512xf32> to vector<8x512xf32>
    %c0_2 = arith.constant 0 : index
    %c0_3 = arith.constant 0 : index
    %2 = vector.load %arg1[%c0_2, %c0_3] : memref<27x512xf32, #tpu.memory_space<vmem>>, vector<27x512xf32>
    %c0_4 = arith.constant 0 : index
    %c0_5 = arith.constant 0 : index
    %3 = vector.load %arg3[%c0_4, %c0_5] : memref<8x216xf32, #tpu.memory_space<vmem>>, vector<8x216xf32>
    %c73_i32 = arith.constant 73 : i32
    %4 = tpu.dynamic_rotate %1 by %c73_i32 dim 1 : vector<8x512xf32>, i32 -> vector<8x512xf32>
    %5 = vector.extract_strided_slice %2 {offsets = [0, 0], sizes = [1, 512], strides = [1, 1]} : vector<27x512xf32> to vector<1x512xf32>
    %6 = vector.broadcast %5 : vector<1x512xf32> to vector<8x512xf32>
    %7 = arith.mulf %4, %6 : vector<8x512xf32>
    %c72_i32 = arith.constant 72 : i32
    %8 = tpu.dynamic_rotate %1 by %c72_i32 dim 1 : vector<8x512xf32>, i32 -> vector<8x512xf32>
    %9 = vector.extract_strided_slice %2 {offsets = [1, 0], sizes = [1, 512], strides = [1, 1]} : vector<27x512xf32> to vector<1x512xf32>
    %10 = vector.broadcast %9 : vector<1x512xf32> to vector<8x512xf32>
    %11 = arith.mulf %8, %10 : vector<8x512xf32>
    %c71_i32 = arith.constant 71 : i32
    %12 = tpu.dynamic_rotate %1 by %c71_i32 dim 1 : vector<8x512xf32>, i32 -> vector<8x512xf32>
    %13 = vector.extract_strided_slice %2 {offsets = [2, 0], sizes = [1, 512], strides = [1, 1]} : vector<27x512xf32> to vector<1x512xf32>
    %14 = vector.broadcast %13 : vector<1x512xf32> to vector<8x512xf32>
    %15 = arith.mulf %12, %14 : vector<8x512xf32>
    %c65_i32 = arith.constant 65 : i32
    %16 = tpu.dynamic_rotate %1 by %c65_i32 dim 1 : vector<8x512xf32>, i32 -> vector<8x512xf32>
    %17 = vector.extract_strided_slice %2 {offsets = [3, 0], sizes = [1, 512], strides = [1, 1]} : vector<27x512xf32> to vector<1x512xf32>
    %18 = vector.broadcast %17 : vector<1x512xf32> to vector<8x512xf32>
    %19 = arith.mulf %16, %18 : vector<8x512xf32>
    %c64_i32 = arith.constant 64 : i32
    %20 = tpu.dynamic_rotate %1 by %c64_i32 dim 1 : vector<8x512xf32>, i32 -> vector<8x512xf32>
    %21 = vector.extract_strided_slice %2 {offsets = [4, 0], sizes = [1, 512], strides = [1, 1]} : vector<27x512xf32> to vector<1x512xf32>
    %22 = vector.broadcast %21 : vector<1x512xf32> to vector<8x512xf32>
    %23 = arith.mulf %20, %22 : vector<8x512xf32>
    %c63_i32 = arith.constant 63 : i32
    %24 = tpu.dynamic_rotate %1 by %c63_i32 dim 1 : vector<8x512xf32>, i32 -> vector<8x512xf32>
    %25 = vector.extract_strided_slice %2 {offsets = [5, 0], sizes = [1, 512], strides = [1, 1]} : vector<27x512xf32> to vector<1x512xf32>
    %26 = vector.broadcast %25 : vector<1x512xf32> to vector<8x512xf32>
    %27 = arith.mulf %24, %26 : vector<8x512xf32>
    %c57_i32 = arith.constant 57 : i32
    %28 = tpu.dynamic_rotate %1 by %c57_i32 dim 1 : vector<8x512xf32>, i32 -> vector<8x512xf32>
    %29 = vector.extract_strided_slice %2 {offsets = [6, 0], sizes = [1, 512], strides = [1, 1]} : vector<27x512xf32> to vector<1x512xf32>
    %30 = vector.broadcast %29 : vector<1x512xf32> to vector<8x512xf32>
    %31 = arith.mulf %28, %30 : vector<8x512xf32>
    %c56_i32 = arith.constant 56 : i32
    %32 = tpu.dynamic_rotate %1 by %c56_i32 dim 1 : vector<8x512xf32>, i32 -> vector<8x512xf32>
    %33 = vector.extract_strided_slice %2 {offsets = [7, 0], sizes = [1, 512], strides = [1, 1]} : vector<27x512xf32> to vector<1x512xf32>
    %34 = vector.broadcast %33 : vector<1x512xf32> to vector<8x512xf32>
    %35 = arith.mulf %32, %34 : vector<8x512xf32>
    %c55_i32 = arith.constant 55 : i32
    %36 = tpu.dynamic_rotate %1 by %c55_i32 dim 1 : vector<8x512xf32>, i32 -> vector<8x512xf32>
    %37 = vector.extract_strided_slice %2 {offsets = [8, 0], sizes = [1, 512], strides = [1, 1]} : vector<27x512xf32> to vector<1x512xf32>
    %38 = vector.broadcast %37 : vector<1x512xf32> to vector<8x512xf32>
    %39 = arith.mulf %36, %38 : vector<8x512xf32>
    %c9_i32 = arith.constant 9 : i32
    %40 = tpu.dynamic_rotate %1 by %c9_i32 dim 1 : vector<8x512xf32>, i32 -> vector<8x512xf32>
    %41 = vector.extract_strided_slice %2 {offsets = [9, 0], sizes = [1, 512], strides = [1, 1]} : vector<27x512xf32> to vector<1x512xf32>
    %42 = vector.broadcast %41 : vector<1x512xf32> to vector<8x512xf32>
    %43 = arith.mulf %40, %42 : vector<8x512xf32>
    %c8_i32 = arith.constant 8 : i32
    %44 = tpu.dynamic_rotate %1 by %c8_i32 dim 1 : vector<8x512xf32>, i32 -> vector<8x512xf32>
    %45 = vector.extract_strided_slice %2 {offsets = [10, 0], sizes = [1, 512], strides = [1, 1]} : vector<27x512xf32> to vector<1x512xf32>
    %46 = vector.broadcast %45 : vector<1x512xf32> to vector<8x512xf32>
    %47 = arith.mulf %44, %46 : vector<8x512xf32>
    %c7_i32 = arith.constant 7 : i32
    %48 = tpu.dynamic_rotate %1 by %c7_i32 dim 1 : vector<8x512xf32>, i32 -> vector<8x512xf32>
    %49 = vector.extract_strided_slice %2 {offsets = [11, 0], sizes = [1, 512], strides = [1, 1]} : vector<27x512xf32> to vector<1x512xf32>
    %50 = vector.broadcast %49 : vector<1x512xf32> to vector<8x512xf32>
    %51 = arith.mulf %48, %50 : vector<8x512xf32>
    %c1_i32 = arith.constant 1 : i32
    %52 = tpu.dynamic_rotate %1 by %c1_i32 dim 1 : vector<8x512xf32>, i32 -> vector<8x512xf32>
    %53 = vector.extract_strided_slice %2 {offsets = [12, 0], sizes = [1, 512], strides = [1, 1]} : vector<27x512xf32> to vector<1x512xf32>
    %54 = vector.broadcast %53 : vector<1x512xf32> to vector<8x512xf32>
    %55 = arith.mulf %52, %54 : vector<8x512xf32>
    %c511_i32 = arith.constant 511 : i32
    %56 = tpu.dynamic_rotate %1 by %c511_i32 dim 1 : vector<8x512xf32>, i32 -> vector<8x512xf32>
    %57 = vector.extract_strided_slice %2 {offsets = [14, 0], sizes = [1, 512], strides = [1, 1]} : vector<27x512xf32> to vector<1x512xf32>
    %58 = vector.broadcast %57 : vector<1x512xf32> to vector<8x512xf32>
    %59 = arith.mulf %56, %58 : vector<8x512xf32>
    %c505_i32 = arith.constant 505 : i32
    %60 = tpu.dynamic_rotate %1 by %c505_i32 dim 1 : vector<8x512xf32>, i32 -> vector<8x512xf32>
    %61 = vector.extract_strided_slice %2 {offsets = [15, 0], sizes = [1, 512], strides = [1, 1]} : vector<27x512xf32> to vector<1x512xf32>
    %62 = vector.broadcast %61 : vector<1x512xf32> to vector<8x512xf32>
    %63 = arith.mulf %60, %62 : vector<8x512xf32>
    %c504_i32 = arith.constant 504 : i32
    %64 = tpu.dynamic_rotate %1 by %c504_i32 dim 1 : vector<8x512xf32>, i32 -> vector<8x512xf32>
    %65 = vector.extract_strided_slice %2 {offsets = [16, 0], sizes = [1, 512], strides = [1, 1]} : vector<27x512xf32> to vector<1x512xf32>
    %66 = vector.broadcast %65 : vector<1x512xf32> to vector<8x512xf32>
    %67 = arith.mulf %64, %66 : vector<8x512xf32>
    %c503_i32 = arith.constant 503 : i32
    %68 = tpu.dynamic_rotate %1 by %c503_i32 dim 1 : vector<8x512xf32>, i32 -> vector<8x512xf32>
    %69 = vector.extract_strided_slice %2 {offsets = [17, 0], sizes = [1, 512], strides = [1, 1]} : vector<27x512xf32> to vector<1x512xf32>
    %70 = vector.broadcast %69 : vector<1x512xf32> to vector<8x512xf32>
    %71 = arith.mulf %68, %70 : vector<8x512xf32>
    %c457_i32 = arith.constant 457 : i32
    %72 = tpu.dynamic_rotate %1 by %c457_i32 dim 1 : vector<8x512xf32>, i32 -> vector<8x512xf32>
    %73 = vector.extract_strided_slice %2 {offsets = [18, 0], sizes = [1, 512], strides = [1, 1]} : vector<27x512xf32> to vector<1x512xf32>
    %74 = vector.broadcast %73 : vector<1x512xf32> to vector<8x512xf32>
    %75 = arith.mulf %72, %74 : vector<8x512xf32>
    %c456_i32 = arith.constant 456 : i32
    %76 = tpu.dynamic_rotate %1 by %c456_i32 dim 1 : vector<8x512xf32>, i32 -> vector<8x512xf32>
    %77 = vector.extract_strided_slice %2 {offsets = [19, 0], sizes = [1, 512], strides = [1, 1]} : vector<27x512xf32> to vector<1x512xf32>
    %78 = vector.broadcast %77 : vector<1x512xf32> to vector<8x512xf32>
    %79 = arith.mulf %76, %78 : vector<8x512xf32>
    %c455_i32 = arith.constant 455 : i32
    %80 = tpu.dynamic_rotate %1 by %c455_i32 dim 1 : vector<8x512xf32>, i32 -> vector<8x512xf32>
    %81 = vector.extract_strided_slice %2 {offsets = [20, 0], sizes = [1, 512], strides = [1, 1]} : vector<27x512xf32> to vector<1x512xf32>
    %82 = vector.broadcast %81 : vector<1x512xf32> to vector<8x512xf32>
    %83 = arith.mulf %80, %82 : vector<8x512xf32>
    %c449_i32 = arith.constant 449 : i32
    %84 = tpu.dynamic_rotate %1 by %c449_i32 dim 1 : vector<8x512xf32>, i32 -> vector<8x512xf32>
    %85 = vector.extract_strided_slice %2 {offsets = [21, 0], sizes = [1, 512], strides = [1, 1]} : vector<27x512xf32> to vector<1x512xf32>
    %86 = vector.broadcast %85 : vector<1x512xf32> to vector<8x512xf32>
    %87 = arith.mulf %84, %86 : vector<8x512xf32>
    %c448_i32 = arith.constant 448 : i32
    %88 = tpu.dynamic_rotate %1 by %c448_i32 dim 1 : vector<8x512xf32>, i32 -> vector<8x512xf32>
    %89 = vector.extract_strided_slice %2 {offsets = [22, 0], sizes = [1, 512], strides = [1, 1]} : vector<27x512xf32> to vector<1x512xf32>
    %90 = vector.broadcast %89 : vector<1x512xf32> to vector<8x512xf32>
    %91 = arith.mulf %88, %90 : vector<8x512xf32>
    %c447_i32 = arith.constant 447 : i32
    %92 = tpu.dynamic_rotate %1 by %c447_i32 dim 1 : vector<8x512xf32>, i32 -> vector<8x512xf32>
    %93 = vector.extract_strided_slice %2 {offsets = [23, 0], sizes = [1, 512], strides = [1, 1]} : vector<27x512xf32> to vector<1x512xf32>
    %94 = vector.broadcast %93 : vector<1x512xf32> to vector<8x512xf32>
    %95 = arith.mulf %92, %94 : vector<8x512xf32>
    %c441_i32 = arith.constant 441 : i32
    %96 = tpu.dynamic_rotate %1 by %c441_i32 dim 1 : vector<8x512xf32>, i32 -> vector<8x512xf32>
    %97 = vector.extract_strided_slice %2 {offsets = [24, 0], sizes = [1, 512], strides = [1, 1]} : vector<27x512xf32> to vector<1x512xf32>
    %98 = vector.broadcast %97 : vector<1x512xf32> to vector<8x512xf32>
    %99 = arith.mulf %96, %98 : vector<8x512xf32>
    %c440_i32 = arith.constant 440 : i32
    %100 = tpu.dynamic_rotate %1 by %c440_i32 dim 1 : vector<8x512xf32>, i32 -> vector<8x512xf32>
    %101 = vector.extract_strided_slice %2 {offsets = [25, 0], sizes = [1, 512], strides = [1, 1]} : vector<27x512xf32> to vector<1x512xf32>
    %102 = vector.broadcast %101 : vector<1x512xf32> to vector<8x512xf32>
    %103 = arith.mulf %100, %102 : vector<8x512xf32>
    %c439_i32 = arith.constant 439 : i32
    %104 = tpu.dynamic_rotate %1 by %c439_i32 dim 1 : vector<8x512xf32>, i32 -> vector<8x512xf32>
    %105 = vector.extract_strided_slice %2 {offsets = [26, 0], sizes = [1, 512], strides = [1, 1]} : vector<27x512xf32> to vector<1x512xf32>
    %106 = vector.broadcast %105 : vector<1x512xf32> to vector<8x512xf32>
    %107 = arith.mulf %104, %106 : vector<8x512xf32>
    %108 = tpu.concatenate %7, %11, %15, %19, %23, %27, %31, %35, %39, %43, %47, %51, %55, %1, %59, %63 in 0 : vector<8x512xf32>, vector<8x512xf32>, vector<8x512xf32>, vector<8x512xf32>, vector<8x512xf32>, vector<8x512xf32>, vector<8x512xf32>, vector<8x512xf32>, vector<8x512xf32>, vector<8x512xf32>, vector<8x512xf32>, vector<8x512xf32>, vector<8x512xf32>, vector<8x512xf32>, vector<8x512xf32>, vector<8x512xf32> -> vector<128x512xf32>
    %109 = tpu.concatenate %67, %71, %75, %79, %83, %87, %91, %95, %99, %103, %107 in 0 : vector<8x512xf32>, vector<8x512xf32>, vector<8x512xf32>, vector<8x512xf32>, vector<8x512xf32>, vector<8x512xf32>, vector<8x512xf32>, vector<8x512xf32>, vector<8x512xf32>, vector<8x512xf32>, vector<8x512xf32> -> vector<88x512xf32>
    %110 = tpu.concatenate %108, %109 in 0 : vector<128x512xf32>, vector<88x512xf32> -> vector<216x512xf32>
    %cst = arith.constant dense<0.000000e+00> : vector<8x512xf32>
    %111 = tpu.matmul %3, %110, %cst {dimension_numbers = #tpu.dot_dimension_numbers<[1], [0], [0], [1], [0, 0, 1, 1], [], []>} : vector<8x216xf32>, vector<216x512xf32>, vector<8x512xf32> -> vector<8x512xf32>
    %c0_6 = arith.constant 0 : index
    %c0_7 = arith.constant 0 : index
    %112 = vector.load %arg4[%c0_6, %c0_7] : memref<8x1xf32, #tpu.memory_space<vmem>>, vector<8x1xf32>
    %113 = vector.broadcast %112 : vector<8x1xf32> to vector<8x512xf32>
    %114 = arith.addf %111, %113 : vector<8x512xf32>
    %cst_8 = arith.constant dense<0.000000e+00> : vector<8xf32>
    %115 = vector.multi_reduction <add>, %114, %cst_8 [1] : vector<8x512xf32> to vector<8xf32>
    %116 = vector.shape_cast %115 : vector<8xf32> to vector<8x1xf32>
    %cst_9 = arith.constant 0.001953125 : f32
    %117 = vector.broadcast %cst_9 : f32 to vector<8x1xf32>
    %118 = arith.mulf %116, %117 : vector<8x1xf32>
    %119 = arith.mulf %114, %114 : vector<8x512xf32>
    %cst_10 = arith.constant dense<0.000000e+00> : vector<8xf32>
    %120 = vector.multi_reduction <add>, %119, %cst_10 [1] : vector<8x512xf32> to vector<8xf32>
    %121 = vector.shape_cast %120 : vector<8xf32> to vector<8x1xf32>
    %cst_11 = arith.constant 0.001953125 : f32
    %122 = vector.broadcast %cst_11 : f32 to vector<8x1xf32>
    %123 = arith.mulf %121, %122 : vector<8x1xf32>
    %124 = arith.mulf %118, %118 : vector<8x1xf32>
    %125 = arith.subf %123, %124 : vector<8x1xf32>
    %126 = vector.broadcast %118 : vector<8x1xf32> to vector<8x512xf32>
    %127 = arith.subf %114, %126 : vector<8x512xf32>
    %cst_12 = arith.constant 0.000000e+00 : f32
    %128 = vector.broadcast %cst_12 : f32 to vector<8x1xf32>
    %129 = arith.maximumf %125, %128 : vector<8x1xf32>
    %cst_13 = arith.constant 9.99999974E-6 : f32
    %130 = vector.broadcast %cst_13 : f32 to vector<8x1xf32>
    %131 = arith.addf %129, %130 : vector<8x1xf32>
    %132 = math.rsqrt %131 : vector<8x1xf32>
    %133 = vector.broadcast %132 : vector<8x1xf32> to vector<8x512xf32>
    %134 = arith.mulf %127, %133 : vector<8x512xf32>
    %cst_14 = arith.constant 0.000000e+00 : f32
    %135 = vector.broadcast %cst_14 : f32 to vector<8x512xf32>
    %136 = arith.cmpf oge, %134, %135 : vector<8x512xf32>
    %cst_15 = arith.constant 0.00999999977 : f32
    %137 = vector.broadcast %cst_15 : f32 to vector<8x512xf32>
    %138 = arith.mulf %137, %134 : vector<8x512xf32>
    %139 = arith.select %136, %134, %138 : vector<8x512xi1>, vector<8x512xf32>
    %c0_16 = arith.constant 0 : index
    %c0_17 = arith.constant 0 : index
    %140 = vector.load %arg5[%c0_16, %c0_17] : memref<8x216xf32, #tpu.memory_space<vmem>>, vector<8x216xf32>
    %c73_i32_18 = arith.constant 73 : i32
    %141 = tpu.dynamic_rotate %139 by %c73_i32_18 dim 1 : vector<8x512xf32>, i32 -> vector<8x512xf32>
    %142 = vector.extract_strided_slice %2 {offsets = [0, 0], sizes = [1, 512], strides = [1, 1]} : vector<27x512xf32> to vector<1x512xf32>
    %143 = vector.broadcast %142 : vector<1x512xf32> to vector<8x512xf32>
    %144 = arith.mulf %141, %143 : vector<8x512xf32>
    %c72_i32_19 = arith.constant 72 : i32
    %145 = tpu.dynamic_rotate %139 by %c72_i32_19 dim 1 : vector<8x512xf32>, i32 -> vector<8x512xf32>
    %146 = vector.extract_strided_slice %2 {offsets = [1, 0], sizes = [1, 512], strides = [1, 1]} : vector<27x512xf32> to vector<1x512xf32>
    %147 = vector.broadcast %146 : vector<1x512xf32> to vector<8x512xf32>
    %148 = arith.mulf %145, %147 : vector<8x512xf32>
    %c71_i32_20 = arith.constant 71 : i32
    %149 = tpu.dynamic_rotate %139 by %c71_i32_20 dim 1 : vector<8x512xf32>, i32 -> vector<8x512xf32>
    %150 = vector.extract_strided_slice %2 {offsets = [2, 0], sizes = [1, 512], strides = [1, 1]} : vector<27x512xf32> to vector<1x512xf32>
    %151 = vector.broadcast %150 : vector<1x512xf32> to vector<8x512xf32>
    %152 = arith.mulf %149, %151 : vector<8x512xf32>
    %c65_i32_21 = arith.constant 65 : i32
    %153 = tpu.dynamic_rotate %139 by %c65_i32_21 dim 1 : vector<8x512xf32>, i32 -> vector<8x512xf32>
    %154 = vector.extract_strided_slice %2 {offsets = [3, 0], sizes = [1, 512], strides = [1, 1]} : vector<27x512xf32> to vector<1x512xf32>
    %155 = vector.broadcast %154 : vector<1x512xf32> to vector<8x512xf32>
    %156 = arith.mulf %153, %155 : vector<8x512xf32>
    %c64_i32_22 = arith.constant 64 : i32
    %157 = tpu.dynamic_rotate %139 by %c64_i32_22 dim 1 : vector<8x512xf32>, i32 -> vector<8x512xf32>
    %158 = vector.extract_strided_slice %2 {offsets = [4, 0], sizes = [1, 512], strides = [1, 1]} : vector<27x512xf32> to vector<1x512xf32>
    %159 = vector.broadcast %158 : vector<1x512xf32> to vector<8x512xf32>
    %160 = arith.mulf %157, %159 : vector<8x512xf32>
    %c63_i32_23 = arith.constant 63 : i32
    %161 = tpu.dynamic_rotate %139 by %c63_i32_23 dim 1 : vector<8x512xf32>, i32 -> vector<8x512xf32>
    %162 = vector.extract_strided_slice %2 {offsets = [5, 0], sizes = [1, 512], strides = [1, 1]} : vector<27x512xf32> to vector<1x512xf32>
    %163 = vector.broadcast %162 : vector<1x512xf32> to vector<8x512xf32>
    %164 = arith.mulf %161, %163 : vector<8x512xf32>
    %c57_i32_24 = arith.constant 57 : i32
    %165 = tpu.dynamic_rotate %139 by %c57_i32_24 dim 1 : vector<8x512xf32>, i32 -> vector<8x512xf32>
    %166 = vector.extract_strided_slice %2 {offsets = [6, 0], sizes = [1, 512], strides = [1, 1]} : vector<27x512xf32> to vector<1x512xf32>
    %167 = vector.broadcast %166 : vector<1x512xf32> to vector<8x512xf32>
    %168 = arith.mulf %165, %167 : vector<8x512xf32>
    %c56_i32_25 = arith.constant 56 : i32
    %169 = tpu.dynamic_rotate %139 by %c56_i32_25 dim 1 : vector<8x512xf32>, i32 -> vector<8x512xf32>
    %170 = vector.extract_strided_slice %2 {offsets = [7, 0], sizes = [1, 512], strides = [1, 1]} : vector<27x512xf32> to vector<1x512xf32>
    %171 = vector.broadcast %170 : vector<1x512xf32> to vector<8x512xf32>
    %172 = arith.mulf %169, %171 : vector<8x512xf32>
    %c55_i32_26 = arith.constant 55 : i32
    %173 = tpu.dynamic_rotate %139 by %c55_i32_26 dim 1 : vector<8x512xf32>, i32 -> vector<8x512xf32>
    %174 = vector.extract_strided_slice %2 {offsets = [8, 0], sizes = [1, 512], strides = [1, 1]} : vector<27x512xf32> to vector<1x512xf32>
    %175 = vector.broadcast %174 : vector<1x512xf32> to vector<8x512xf32>
    %176 = arith.mulf %173, %175 : vector<8x512xf32>
    %c9_i32_27 = arith.constant 9 : i32
    %177 = tpu.dynamic_rotate %139 by %c9_i32_27 dim 1 : vector<8x512xf32>, i32 -> vector<8x512xf32>
    %178 = vector.extract_strided_slice %2 {offsets = [9, 0], sizes = [1, 512], strides = [1, 1]} : vector<27x512xf32> to vector<1x512xf32>
    %179 = vector.broadcast %178 : vector<1x512xf32> to vector<8x512xf32>
    %180 = arith.mulf %177, %179 : vector<8x512xf32>
    %c8_i32_28 = arith.constant 8 : i32
    %181 = tpu.dynamic_rotate %139 by %c8_i32_28 dim 1 : vector<8x512xf32>, i32 -> vector<8x512xf32>
    %182 = vector.extract_strided_slice %2 {offsets = [10, 0], sizes = [1, 512], strides = [1, 1]} : vector<27x512xf32> to vector<1x512xf32>
    %183 = vector.broadcast %182 : vector<1x512xf32> to vector<8x512xf32>
    %184 = arith.mulf %181, %183 : vector<8x512xf32>
    %c7_i32_29 = arith.constant 7 : i32
    %185 = tpu.dynamic_rotate %139 by %c7_i32_29 dim 1 : vector<8x512xf32>, i32 -> vector<8x512xf32>
    %186 = vector.extract_strided_slice %2 {offsets = [11, 0], sizes = [1, 512], strides = [1, 1]} : vector<27x512xf32> to vector<1x512xf32>
    %187 = vector.broadcast %186 : vector<1x512xf32> to vector<8x512xf32>
    %188 = arith.mulf %185, %187 : vector<8x512xf32>
    %c1_i32_30 = arith.constant 1 : i32
    %189 = tpu.dynamic_rotate %139 by %c1_i32_30 dim 1 : vector<8x512xf32>, i32 -> vector<8x512xf32>
    %190 = vector.extract_strided_slice %2 {offsets = [12, 0], sizes = [1, 512], strides = [1, 1]} : vector<27x512xf32> to vector<1x512xf32>
    %191 = vector.broadcast %190 : vector<1x512xf32> to vector<8x512xf32>
    %192 = arith.mulf %189, %191 : vector<8x512xf32>
    %c511_i32_31 = arith.constant 511 : i32
    %193 = tpu.dynamic_rotate %139 by %c511_i32_31 dim 1 : vector<8x512xf32>, i32 -> vector<8x512xf32>
    %194 = vector.extract_strided_slice %2 {offsets = [14, 0], sizes = [1, 512], strides = [1, 1]} : vector<27x512xf32> to vector<1x512xf32>
    %195 = vector.broadcast %194 : vector<1x512xf32> to vector<8x512xf32>
    %196 = arith.mulf %193, %195 : vector<8x512xf32>
    %c505_i32_32 = arith.constant 505 : i32
    %197 = tpu.dynamic_rotate %139 by %c505_i32_32 dim 1 : vector<8x512xf32>, i32 -> vector<8x512xf32>
    %198 = vector.extract_strided_slice %2 {offsets = [15, 0], sizes = [1, 512], strides = [1, 1]} : vector<27x512xf32> to vector<1x512xf32>
    %199 = vector.broadcast %198 : vector<1x512xf32> to vector<8x512xf32>
    %200 = arith.mulf %197, %199 : vector<8x512xf32>
    %c504_i32_33 = arith.constant 504 : i32
    %201 = tpu.dynamic_rotate %139 by %c504_i32_33 dim 1 : vector<8x512xf32>, i32 -> vector<8x512xf32>
    %202 = vector.extract_strided_slice %2 {offsets = [16, 0], sizes = [1, 512], strides = [1, 1]} : vector<27x512xf32> to vector<1x512xf32>
    %203 = vector.broadcast %202 : vector<1x512xf32> to vector<8x512xf32>
    %204 = arith.mulf %201, %203 : vector<8x512xf32>
    %c503_i32_34 = arith.constant 503 : i32
    %205 = tpu.dynamic_rotate %139 by %c503_i32_34 dim 1 : vector<8x512xf32>, i32 -> vector<8x512xf32>
    %206 = vector.extract_strided_slice %2 {offsets = [17, 0], sizes = [1, 512], strides = [1, 1]} : vector<27x512xf32> to vector<1x512xf32>
    %207 = vector.broadcast %206 : vector<1x512xf32> to vector<8x512xf32>
    %208 = arith.mulf %205, %207 : vector<8x512xf32>
    %c457_i32_35 = arith.constant 457 : i32
    %209 = tpu.dynamic_rotate %139 by %c457_i32_35 dim 1 : vector<8x512xf32>, i32 -> vector<8x512xf32>
    %210 = vector.extract_strided_slice %2 {offsets = [18, 0], sizes = [1, 512], strides = [1, 1]} : vector<27x512xf32> to vector<1x512xf32>
    %211 = vector.broadcast %210 : vector<1x512xf32> to vector<8x512xf32>
    %212 = arith.mulf %209, %211 : vector<8x512xf32>
    %c456_i32_36 = arith.constant 456 : i32
    %213 = tpu.dynamic_rotate %139 by %c456_i32_36 dim 1 : vector<8x512xf32>, i32 -> vector<8x512xf32>
    %214 = vector.extract_strided_slice %2 {offsets = [19, 0], sizes = [1, 512], strides = [1, 1]} : vector<27x512xf32> to vector<1x512xf32>
    %215 = vector.broadcast %214 : vector<1x512xf32> to vector<8x512xf32>
    %216 = arith.mulf %213, %215 : vector<8x512xf32>
    %c455_i32_37 = arith.constant 455 : i32
    %217 = tpu.dynamic_rotate %139 by %c455_i32_37 dim 1 : vector<8x512xf32>, i32 -> vector<8x512xf32>
    %218 = vector.extract_strided_slice %2 {offsets = [20, 0], sizes = [1, 512], strides = [1, 1]} : vector<27x512xf32> to vector<1x512xf32>
    %219 = vector.broadcast %218 : vector<1x512xf32> to vector<8x512xf32>
    %220 = arith.mulf %217, %219 : vector<8x512xf32>
    %c449_i32_38 = arith.constant 449 : i32
    %221 = tpu.dynamic_rotate %139 by %c449_i32_38 dim 1 : vector<8x512xf32>, i32 -> vector<8x512xf32>
    %222 = vector.extract_strided_slice %2 {offsets = [21, 0], sizes = [1, 512], strides = [1, 1]} : vector<27x512xf32> to vector<1x512xf32>
    %223 = vector.broadcast %222 : vector<1x512xf32> to vector<8x512xf32>
    %224 = arith.mulf %221, %223 : vector<8x512xf32>
    %c448_i32_39 = arith.constant 448 : i32
    %225 = tpu.dynamic_rotate %139 by %c448_i32_39 dim 1 : vector<8x512xf32>, i32 -> vector<8x512xf32>
    %226 = vector.extract_strided_slice %2 {offsets = [22, 0], sizes = [1, 512], strides = [1, 1]} : vector<27x512xf32> to vector<1x512xf32>
    %227 = vector.broadcast %226 : vector<1x512xf32> to vector<8x512xf32>
    %228 = arith.mulf %225, %227 : vector<8x512xf32>
    %c447_i32_40 = arith.constant 447 : i32
    %229 = tpu.dynamic_rotate %139 by %c447_i32_40 dim 1 : vector<8x512xf32>, i32 -> vector<8x512xf32>
    %230 = vector.extract_strided_slice %2 {offsets = [23, 0], sizes = [1, 512], strides = [1, 1]} : vector<27x512xf32> to vector<1x512xf32>
    %231 = vector.broadcast %230 : vector<1x512xf32> to vector<8x512xf32>
    %232 = arith.mulf %229, %231 : vector<8x512xf32>
    %c441_i32_41 = arith.constant 441 : i32
    %233 = tpu.dynamic_rotate %139 by %c441_i32_41 dim 1 : vector<8x512xf32>, i32 -> vector<8x512xf32>
    %234 = vector.extract_strided_slice %2 {offsets = [24, 0], sizes = [1, 512], strides = [1, 1]} : vector<27x512xf32> to vector<1x512xf32>
    %235 = vector.broadcast %234 : vector<1x512xf32> to vector<8x512xf32>
    %236 = arith.mulf %233, %235 : vector<8x512xf32>
    %c440_i32_42 = arith.constant 440 : i32
    %237 = tpu.dynamic_rotate %139 by %c440_i32_42 dim 1 : vector<8x512xf32>, i32 -> vector<8x512xf32>
    %238 = vector.extract_strided_slice %2 {offsets = [25, 0], sizes = [1, 512], strides = [1, 1]} : vector<27x512xf32> to vector<1x512xf32>
    %239 = vector.broadcast %238 : vector<1x512xf32> to vector<8x512xf32>
    %240 = arith.mulf %237, %239 : vector<8x512xf32>
    %c439_i32_43 = arith.constant 439 : i32
    %241 = tpu.dynamic_rotate %139 by %c439_i32_43 dim 1 : vector<8x512xf32>, i32 -> vector<8x512xf32>
    %242 = vector.extract_strided_slice %2 {offsets = [26, 0], sizes = [1, 512], strides = [1, 1]} : vector<27x512xf32> to vector<1x512xf32>
    %243 = vector.broadcast %242 : vector<1x512xf32> to vector<8x512xf32>
    %244 = arith.mulf %241, %243 : vector<8x512xf32>
    %245 = tpu.concatenate %144, %148, %152, %156, %160, %164, %168, %172, %176, %180, %184, %188, %192, %139, %196, %200 in 0 : vector<8x512xf32>, vector<8x512xf32>, vector<8x512xf32>, vector<8x512xf32>, vector<8x512xf32>, vector<8x512xf32>, vector<8x512xf32>, vector<8x512xf32>, vector<8x512xf32>, vector<8x512xf32>, vector<8x512xf32>, vector<8x512xf32>, vector<8x512xf32>, vector<8x512xf32>, vector<8x512xf32>, vector<8x512xf32> -> vector<128x512xf32>
    %246 = tpu.concatenate %204, %208, %212, %216, %220, %224, %228, %232, %236, %240, %244 in 0 : vector<8x512xf32>, vector<8x512xf32>, vector<8x512xf32>, vector<8x512xf32>, vector<8x512xf32>, vector<8x512xf32>, vector<8x512xf32>, vector<8x512xf32>, vector<8x512xf32>, vector<8x512xf32>, vector<8x512xf32> -> vector<88x512xf32>
    %247 = tpu.concatenate %245, %246 in 0 : vector<128x512xf32>, vector<88x512xf32> -> vector<216x512xf32>
    %cst_44 = arith.constant dense<0.000000e+00> : vector<8x512xf32>
    %248 = tpu.matmul %140, %247, %cst_44 {dimension_numbers = #tpu.dot_dimension_numbers<[1], [0], [0], [1], [0, 0, 1, 1], [], []>} : vector<8x216xf32>, vector<216x512xf32>, vector<8x512xf32> -> vector<8x512xf32>
    %c0_45 = arith.constant 0 : index
    %c0_46 = arith.constant 0 : index
    %249 = vector.load %arg6[%c0_45, %c0_46] : memref<8x1xf32, #tpu.memory_space<vmem>>, vector<8x1xf32>
    %250 = vector.broadcast %249 : vector<8x1xf32> to vector<8x512xf32>
    %251 = arith.addf %248, %250 : vector<8x512xf32>
    %cst_47 = arith.constant dense<0.000000e+00> : vector<8xf32>
    %252 = vector.multi_reduction <add>, %251, %cst_47 [1] : vector<8x512xf32> to vector<8xf32>
    %253 = vector.shape_cast %252 : vector<8xf32> to vector<8x1xf32>
    %cst_48 = arith.constant 0.001953125 : f32
    %254 = vector.broadcast %cst_48 : f32 to vector<8x1xf32>
    %255 = arith.mulf %253, %254 : vector<8x1xf32>
    %256 = arith.mulf %251, %251 : vector<8x512xf32>
    %cst_49 = arith.constant dense<0.000000e+00> : vector<8xf32>
    %257 = vector.multi_reduction <add>, %256, %cst_49 [1] : vector<8x512xf32> to vector<8xf32>
    %258 = vector.shape_cast %257 : vector<8xf32> to vector<8x1xf32>
    %cst_50 = arith.constant 0.001953125 : f32
    %259 = vector.broadcast %cst_50 : f32 to vector<8x1xf32>
    %260 = arith.mulf %258, %259 : vector<8x1xf32>
    %261 = arith.mulf %255, %255 : vector<8x1xf32>
    %262 = arith.subf %260, %261 : vector<8x1xf32>
    %263 = vector.broadcast %255 : vector<8x1xf32> to vector<8x512xf32>
    %264 = arith.subf %251, %263 : vector<8x512xf32>
    %cst_51 = arith.constant 0.000000e+00 : f32
    %265 = vector.broadcast %cst_51 : f32 to vector<8x1xf32>
    %266 = arith.maximumf %262, %265 : vector<8x1xf32>
    %cst_52 = arith.constant 9.99999974E-6 : f32
    %267 = vector.broadcast %cst_52 : f32 to vector<8x1xf32>
    %268 = arith.addf %266, %267 : vector<8x1xf32>
    %269 = math.rsqrt %268 : vector<8x1xf32>
    %270 = vector.broadcast %269 : vector<8x1xf32> to vector<8x512xf32>
    %271 = arith.mulf %264, %270 : vector<8x512xf32>
    %c0_53 = arith.constant 0 : index
    %c0_54 = arith.constant 0 : index
    %272 = vector.load %arg7[%c0_53, %c0_54] : memref<8x8xf32, #tpu.memory_space<vmem>>, vector<8x8xf32>
    %cst_55 = arith.constant dense<0.000000e+00> : vector<8x512xf32>
    %273 = tpu.matmul %272, %1, %cst_55 {dimension_numbers = #tpu.dot_dimension_numbers<[1], [0], [0], [1], [0, 0, 1, 1], [], []>} : vector<8x8xf32>, vector<8x512xf32>, vector<8x512xf32> -> vector<8x512xf32>
    %c0_56 = arith.constant 0 : index
    %c0_57 = arith.constant 0 : index
    %274 = vector.load %arg8[%c0_56, %c0_57] : memref<8x1xf32, #tpu.memory_space<vmem>>, vector<8x1xf32>
    %275 = vector.broadcast %274 : vector<8x1xf32> to vector<8x512xf32>
    %276 = arith.addf %273, %275 : vector<8x512xf32>
    %277 = arith.addf %271, %276 : vector<8x512xf32>
    %cst_58 = arith.constant 0.000000e+00 : f32
    %278 = vector.broadcast %cst_58 : f32 to vector<8x512xf32>
    %279 = arith.cmpf oge, %277, %278 : vector<8x512xf32>
    %cst_59 = arith.constant 0.00999999977 : f32
    %280 = vector.broadcast %cst_59 : f32 to vector<8x512xf32>
    %281 = arith.mulf %280, %277 : vector<8x512xf32>
    %282 = arith.select %279, %277, %281 : vector<8x512xi1>, vector<8x512xf32>
    %c0_60 = arith.constant 0 : index
    %c0_61 = arith.constant 0 : index
    %c0_62 = arith.constant 0 : index
    %283 = vector.load %arg9[%c0_60, %c0_61, %c0_62] : memref<1x8x512xf32, #tpu.memory_space<vmem>>, vector<1x8x512xf32>
    %284 = vector.shape_cast %283 : vector<1x8x512xf32> to vector<8x512xf32>
    %285 = vector.shape_cast %282 : vector<8x512xf32> to vector<1x8x512xf32>
    tpu.vector_store %arg9[%c0_60, %c0_61, %c0_62], %285 {strides = array<i32>} : memref<1x8x512xf32, #tpu.memory_space<vmem>>, vector<1x8x512xf32>,
    return
  }
  func.func @transform_0(%arg0: i32) -> (i32, i32) {
    %c0_i32 = arith.constant 0 : i32
    %c0_i32_0 = arith.constant 0 : i32
    %c0_i32_1 = arith.constant 0 : i32
    return %c0_i32, %c0_i32_0 : i32, i32
  }
  func.func @transform_1(%arg0: i32) -> (i32, i32, i32) {
    %c0_i32 = arith.constant 0 : i32
    %c0_i32_0 = arith.constant 0 : i32
    %c0_i32_1 = arith.constant 0 : i32
    return %arg0, %c0_i32, %c0_i32_0 : i32, i32, i32
  }
  func.func @transform_2(%arg0: i32) -> (i32, i32) {
    %c0_i32 = arith.constant 0 : i32
    %c0_i32_0 = arith.constant 0 : i32
    %c0_i32_1 = arith.constant 0 : i32
    return %c0_i32, %c0_i32_0 : i32, i32
  }
  func.func @transform_3(%arg0: i32) -> (i32, i32) {
    %c0_i32 = arith.constant 0 : i32
    %c0_i32_0 = arith.constant 0 : i32
    %c0_i32_1 = arith.constant 0 : i32
    return %c0_i32, %c0_i32_0 : i32, i32
  }
  func.func @transform_4(%arg0: i32) -> (i32, i32) {
    %c0_i32 = arith.constant 0 : i32
    %c0_i32_0 = arith.constant 0 : i32
    %c0_i32_1 = arith.constant 0 : i32
    return %c0_i32, %c0_i32_0 : i32, i32
  }
  func.func @transform_5(%arg0: i32) -> (i32, i32) {
    %c0_i32 = arith.constant 0 : i32
    %c0_i32_0 = arith.constant 0 : i32
    %c0_i32_1 = arith.constant 0 : i32
    return %c0_i32, %c0_i32_0 : i32, i32
  }
  func.func @transform_6(%arg0: i32) -> (i32, i32) {
    %c0_i32 = arith.constant 0 : i32
    %c0_i32_0 = arith.constant 0 : i32
    %c0_i32_1 = arith.constant 0 : i32
    return %c0_i32, %c0_i32_0 : i32, i32
  }
  func.func @transform_7(%arg0: i32) -> (i32, i32) {
    %c0_i32 = arith.constant 0 : i32
    %c0_i32_0 = arith.constant 0 : i32
    %c0_i32_1 = arith.constant 0 : i32
    return %c0_i32, %c0_i32_0 : i32, i32
  }
  func.func @transform_8(%arg0: i32) -> (i32, i32, i32) {
    %c0_i32 = arith.constant 0 : i32
    %c0_i32_0 = arith.constant 0 : i32
    %c0_i32_1 = arith.constant 0 : i32
    return %arg0, %c0_i32, %c0_i32_0 : i32, i32, i32
  }
}

</mosaic_0001>

<llo_original>
// kernel: res_conv_block.1
$region0: #{res_conv_block.1}
  #allocation0 [shape = 'u32[]', space=smem, size = 0x4, offset = 0x4, fixed_abs, tag = 'smem constant byte address 0x4 - core index']
  #allocation1 [shape = 'u32[72,128]{1,0:T(1,128)}', space=vmem, size = 0x9000, scoped, tag = 'internal scratch']
  %s0 = inlined_call_operand.vmem [shape: f32[27,512], index: 0, kind: input, shape index: {}]
  %s1 = inlined_call_operand.vmem [shape: f32[2,8,512], index: 1, kind: input, shape index: {}]
  %s2 = inlined_call_operand.vmem [shape: f32[8,216], index: 2, kind: input, shape index: {}]
  %s3 = inlined_call_operand.vmem [shape: f32[8,1], index: 3, kind: input, shape index: {}]
  %s4 = inlined_call_operand.vmem [shape: f32[8,216], index: 4, kind: input, shape index: {}]
  %s5 = inlined_call_operand.vmem [shape: f32[8,1], index: 5, kind: input, shape index: {}]
  %s6 = inlined_call_operand.vmem [shape: f32[8,8], index: 6, kind: input, shape index: {}]
  %s7 = inlined_call_operand.vmem [shape: f32[8,1], index: 7, kind: input, shape index: {}]
  %s8 = inlined_call_operand.vmem [shape: f32[2,8,512], index: 8, kind: output, shape index: {}]
  %s9 = sld [smem:[#allocation0]]
  $region65: #{res_conv_block.1} parent=0
    _
  %s11 = ssub.s32 1, %s9
  %s12 = scalar_select 0, %s11, %s9
  loop: start=0, step=1, limit=4
  $region2: #{res_conv_block.1} parent=0 // loop_pre_header
    _
  $region3: #{res_conv_block.1} parent=0 // loop_header
    %s14 = sphi 0, %s18
    %p15 = scmp.ge.s32.totalorder %s14, 4
    %s22 = sphi 0, %s22
    %s24 = sphi 0, %s22
    %s25 = sphi 0, %s24
    %s39 = sphi 0, %s25
    %s45 = sphi 0, %s47
    %s48 = sphi 0, %s45
    %s49 = sphi 0, %s48
    %s65 = sphi 0, %s49
    %s69 = sphi 0, %s69
    %s71 = sphi 0, %s69
    %s72 = sphi 0, %s71
    %s86 = sphi 0, %s72
    %s90 = sphi 0, %s90
    %s92 = sphi 0, %s90
    %s93 = sphi 0, %s92
    %s107 = sphi 0, %s93
    %s111 = sphi 0, %s111
    %s113 = sphi 0, %s111
    %s114 = sphi 0, %s113
    %s128 = sphi 0, %s114
    %s132 = sphi 0, %s132
    %s134 = sphi 0, %s132
    %s135 = sphi 0, %s134
    %s149 = sphi 0, %s135
    %s153 = sphi 0, %s153
    %s155 = sphi 0, %s153
    %s156 = sphi 0, %s155
    %s170 = sphi 0, %s156
    %s174 = sphi 0, %s174
    %s176 = sphi 0, %s174
    %s177 = sphi 0, %s176
    %s191 = sphi 0, %s177
    %s197 = sphi 0, %s199
    %s200 = sphi 0, %s197
    %s201 = sphi 0, %s200
    %s217 = sphi 0, %s201
  $region4: #{res_conv_block.1} parent=0 // loop_header_branch
    %17 = sbr.rel (%p15) target = $region8
  $region5: #{res_conv_block.1} parent=0 // loop_body
    %s19 = ssub.s32 %s14, 1
    %s20 = ssub.s32 %s14, 2
    %s21 = sadd.s32 %s14, 1
    %s23 = sadd.s32 %s22, 1
    %p26 = scmp.eq.s32.totalorder %s14, 1
    %p27 = scmp.ne.s32.totalorder %s22, %s24
    %p28 = scmp.eq.s32.totalorder %s14, 0
    %p29 = por %p27, %p28
    %p30 = scmp.ne.s32.totalorder %s22, %s24
    %p31 = scmp.eq.s32.totalorder %s19, 1
    %p32 = por %p30, %p31
    %p33 = scmp.ne.s32.totalorder %s24, %s25
    %p34 = scmp.eq.s32.totalorder %s19, 0
    %p35 = por %p33, %p34
    %p36 = scmp.ne.s32.totalorder %s24, %s25
    %p37 = scmp.eq.s32.totalorder %s20, 1
    %p38 = por %p36, %p37
    %p40 = scmp.ne.s32.totalorder %s25, %s39
    %p41 = scmp.eq.s32.totalorder %s20, 0
    %p42 = por %p40, %p41
    %s43 = ssub.s32 %s14, %s21
    %p44 = scmp.eq.s32.totalorder %s43, 0
    %s46 = sadd.s32 %s45, 1
    %s47 = scalar_select %p44, %s45, %s46
    %p50 = pneg %p44
    %p51 = scmp.eq.s32.totalorder %s14, 1
    %p52 = por %p50, %p51
    %p53 = scmp.ne.s32.totalorder %s45, %s48
    %p54 = scmp.eq.s32.totalorder %s14, 0
    %p55 = por %p53, %p54
    %p56 = scmp.ne.s32.totalorder %s45, %s48
    %p57 = scmp.eq.s32.totalorder %s19, 1
    %p58 = por %p56, %p57
    %p59 = scmp.ne.s32.totalorder %s48, %s49
    %p60 = scmp.eq.s32.totalorder %s19, 0
    %p61 = por %p59, %p60
    %p62 = scmp.ne.s32.totalorder %s48, %s49
    %p63 = scmp.eq.s32.totalorder %s20, 1
    %p64 = por %p62, %p63
    %p66 = scmp.ne.s32.totalorder %s49, %s65
    %p67 = scmp.eq.s32.totalorder %s20, 0
    %p68 = por %p66, %p67
    %s70 = sadd.s32 %s69, 1
    %p73 = scmp.eq.s32.totalorder %s14, 1
    %p74 = scmp.ne.s32.totalorder %s69, %s71
    %p75 = scmp.eq.s32.totalorder %s14, 0
    %p76 = por %p74, %p75
    %p77 = scmp.ne.s32.totalorder %s69, %s71
    %p78 = scmp.eq.s32.totalorder %s19, 1
    %p79 = por %p77, %p78
    %p80 = scmp.ne.s32.totalorder %s71, %s72
    %p81 = scmp.eq.s32.totalorder %s19, 0
    %p82 = por %p80, %p81
    %p83 = scmp.ne.s32.totalorder %s71, %s72
    %p84 = scmp.eq.s32.totalorder %s20, 1
    %p85 = por %p83, %p84
    %p87 = scmp.ne.s32.totalorder %s72, %s86
    %p88 = scmp.eq.s32.totalorder %s20, 0
    %p89 = por %p87, %p88
    %s91 = sadd.s32 %s90, 1
    %p94 = scmp.eq.s32.totalorder %s14, 1
    %p95 = scmp.ne.s32.totalorder %s90, %s92
    %p96 = scmp.eq.s32.totalorder %s14, 0
    %p97 = por %p95, %p96
    %p98 = scmp.ne.s32.totalorder %s90, %s92
    %p99 = scmp.eq.s32.totalorder %s19, 1
    %p100 = por %p98, %p99
    %p101 = scmp.ne.s32.totalorder %s92, %s93
    %p102 = scmp.eq.s32.totalorder %s19, 0
    %p103 = por %p101, %p102
    %p104 = scmp.ne.s32.totalorder %s92, %s93
    %p105 = scmp.eq.s32.totalorder %s20, 1
    %p106 = por %p104, %p105
    %p108 = scmp.ne.s32.totalorder %s93, %s107
    %p109 = scmp.eq.s32.totalorder %s20, 0
    %p110 = por %p108, %p109
    %s112 = sadd.s32 %s111, 1
    %p115 = scmp.eq.s32.totalorder %s14, 1
    %p116 = scmp.ne.s32.totalorder %s111, %s113
    %p117 = scmp.eq.s32.totalorder %s14, 0
    %p118 = por %p116, %p117
    %p119 = scmp.ne.s32.totalorder %s111, %s113
    %p120 = scmp.eq.s32.totalorder %s19, 1
    %p121 = por %p119, %p120
    %p122 = scmp.ne.s32.totalorder %s113, %s114
    %p123 = scmp.eq.s32.totalorder %s19, 0
    %p124 = por %p122, %p123
    %p125 = scmp.ne.s32.totalorder %s113, %s114
    %p126 = scmp.eq.s32.totalorder %s20, 1
    %p127 = por %p125, %p126
    %p129 = scmp.ne.s32.totalorder %s114, %s128
    %p130 = scmp.eq.s32.totalorder %s20, 0
    %p131 = por %p129, %p130
    %s133 = sadd.s32 %s132, 1
    %p136 = scmp.eq.s32.totalorder %s14, 1
    %p137 = scmp.ne.s32.totalorder %s132, %s134
    %p138 = scmp.eq.s32.totalorder %s14, 0
    %p139 = por %p137, %p138
    %p140 = scmp.ne.s32.totalorder %s132, %s134
    %p141 = scmp.eq.s32.totalorder %s19, 1
    %p142 = por %p140, %p141
    %p143 = scmp.ne.s32.totalorder %s134, %s135
    %p144 = scmp.eq.s32.totalorder %s19, 0
    %p145 = por %p143, %p144
    %p146 = scmp.ne.s32.totalorder %s134, %s135
    %p147 = scmp.eq.s32.totalorder %s20, 1
    %p148 = por %p146, %p147
    %p150 = scmp.ne.s32.totalorder %s135, %s149
    %p151 = scmp.eq.s32.totalorder %s20, 0
    %p152 = por %p150, %p151
    %s154 = sadd.s32 %s153, 1
    %p157 = scmp.eq.s32.totalorder %s14, 1
    %p158 = scmp.ne.s32.totalorder %s153, %s155
    %p159 = scmp.eq.s32.totalorder %s14, 0
    %p160 = por %p158, %p159
    %p161 = scmp.ne.s32.totalorder %s153, %s155
    %p162 = scmp.eq.s32.totalorder %s19, 1
    %p163 = por %p161, %p162
    %p164 = scmp.ne.s32.totalorder %s155, %s156
    %p165 = scmp.eq.s32.totalorder %s19, 0
    %p166 = por %p164, %p165
    %p167 = scmp.ne.s32.totalorder %s155, %s156
    %p168 = scmp.eq.s32.totalorder %s20, 1
    %p169 = por %p167, %p168
    %p171 = scmp.ne.s32.totalorder %s156, %s170
    %p172 = scmp.eq.s32.totalorder %s20, 0
    %p173 = por %p171, %p172
    %s175 = sadd.s32 %s174, 1
    %p178 = scmp.eq.s32.totalorder %s14, 1
    %p179 = scmp.ne.s32.totalorder %s174, %s176
    %p180 = scmp.eq.s32.totalorder %s14, 0
    %p181 = por %p179, %p180
    %p182 = scmp.ne.s32.totalorder %s174, %s176
    %p183 = scmp.eq.s32.totalorder %s19, 1
    %p184 = por %p182, %p183
    %p185 = scmp.ne.s32.totalorder %s176, %s177
    %p186 = scmp.eq.s32.totalorder %s19, 0
    %p187 = por %p185, %p186
    %p188 = scmp.ne.s32.totalorder %s176, %s177
    %p189 = scmp.eq.s32.totalorder %s20, 1
    %p190 = por %p188, %p189
    %p192 = scmp.ne.s32.totalorder %s177, %s191
    %p193 = scmp.eq.s32.totalorder %s20, 0
    %p194 = por %p192, %p193
    %s195 = ssub.s32 %s14, %s21
    %p196 = scmp.eq.s32.totalorder %s195, 0
    %s198 = sadd.s32 %s197, 1
    %s199 = scalar_select %p196, %s197, %s198
    %p202 = pneg %p196
    %p203 = scmp.eq.s32.totalorder %s14, 1
    %p204 = por %p202, %p203
    %p205 = scmp.ne.s32.totalorder %s197, %s200
    %p206 = scmp.eq.s32.totalorder %s14, 0
    %p207 = por %p205, %p206
    %p208 = scmp.ne.s32.totalorder %s197, %s200
    %p209 = scmp.eq.s32.totalorder %s19, 1
    %p210 = por %p208, %p209
    %p211 = scmp.ne.s32.totalorder %s200, %s201
    %p212 = scmp.eq.s32.totalorder %s19, 0
    %p213 = por %p211, %p212
    %p214 = scmp.ne.s32.totalorder %s200, %s201
    %p215 = scmp.eq.s32.totalorder %s20, 1
    %p216 = por %p214, %p215
    %p218 = scmp.ne.s32.totalorder %s201, %s217
    %p219 = scmp.eq.s32.totalorder %s20, 0
    %p220 = por %p218, %p219
    %p221 = scmp.le.s32.totalorder 1, %s14
    %p222 = scmp.lt.s32.totalorder %s14, 3
    %p223 = pnand %p221, %p222
    %p224 = pneg %p223
    // Predicated region
    $region9: #{res_conv_block.1} parent=5 // pred_check
      _
    $region10: #{res_conv_block.1} parent=5 // pred_check_branch
      %226 = sbr.rel (%p223) target = $region12
    $region11: #{res_conv_block.1} parent=5 // pred_region
      %s227 = ssub.s32 %s14, 1
      // Predicated region
      $region13: #{res_conv_block.1} parent=11 // pred_check
        %p228 = pneg %p35
      $region14: #{res_conv_block.1} parent=11 // pred_check_branch
        %230 = sbr.rel (%p228) target = $region16
      $region15: #{res_conv_block.1} parent=11 // pred_region
        _
      $region16: #{res_conv_block.1} parent=11 // pred_fallthru
        _
      // Predicated region
      $region17: #{res_conv_block.1} parent=11 // pred_check
        %p231 = pneg %p82
      $region18: #{res_conv_block.1} parent=11 // pred_check_branch
        %233 = sbr.rel (%p231) target = $region20
      $region19: #{res_conv_block.1} parent=11 // pred_region
        _
      $region20: #{res_conv_block.1} parent=11 // pred_fallthru
        _
      // Predicated region
      $region21: #{res_conv_block.1} parent=11 // pred_check
        %p234 = pneg %p103
      $region22: #{res_conv_block.1} parent=11 // pred_check_branch
        %236 = sbr.rel (%p234) target = $region24
      $region23: #{res_conv_block.1} parent=11 // pred_region
        _
      $region24: #{res_conv_block.1} parent=11 // pred_fallthru
        _
      // Predicated region
      $region25: #{res_conv_block.1} parent=11 // pred_check
        %p237 = pneg %p124
      $region26: #{res_conv_block.1} parent=11 // pred_check_branch
        %239 = sbr.rel (%p237) target = $region28
      $region27: #{res_conv_block.1} parent=11 // pred_region
        _
      $region28: #{res_conv_block.1} parent=11 // pred_fallthru
        _
      // Predicated region
      $region29: #{res_conv_block.1} parent=11 // pred_check
        %p240 = pneg %p145
      $region30: #{res_conv_block.1} parent=11 // pred_check_branch
        %242 = sbr.rel (%p240) target = $region32
      $region31: #{res_conv_block.1} parent=11 // pred_region
        _
      $region32: #{res_conv_block.1} parent=11 // pred_fallthru
        _
      // Predicated region
      $region33: #{res_conv_block.1} parent=11 // pred_check
        %p243 = pneg %p166
      $region34: #{res_conv_block.1} parent=11 // pred_check_branch
        %245 = sbr.rel (%p243) target = $region36
      $region35: #{res_conv_block.1} parent=11 // pred_region
        _
      $region36: #{res_conv_block.1} parent=11 // pred_fallthru
        _
      // Predicated region
      $region37: #{res_conv_block.1} parent=11 // pred_check
        %p246 = pneg %p187
      $region38: #{res_conv_block.1} parent=11 // pred_check_branch
        %248 = sbr.rel (%p246) target = $region40
      $region39: #{res_conv_block.1} parent=11 // pred_region
        _
      $region40: #{res_conv_block.1} parent=11 // pred_fallthru
        _
    $region12: #{res_conv_block.1} parent=5 // pred_fallthru
      _
    %p249 = scmp.lt.s32.totalorder %s14, 2
    // Predicated region
    $region41: #{res_conv_block.1} parent=5 // pred_check
      %p250 = pneg %p249
    $region42: #{res_conv_block.1} parent=5 // pred_check_branch
      %252 = sbr.rel (%p250) target = $region44
    $region43: #{res_conv_block.1} parent=5 // pred_region
      // Predicated region
      $region45: #{res_conv_block.1} parent=43 // pred_check
        %p253 = pneg %p55
      $region46: #{res_conv_block.1} parent=43 // pred_check_branch
        %255 = sbr.rel (%p253) target = $region48
      $region47: #{res_conv_block.1} parent=43 // pred_region
        %p256 = scmp.lt.s32.totalorder %s14, 1
        %s257 = scalar_select %p256, %s14, 1
        %s258 = smul.addr %s257, 4
        %s259 = smul.addr %s258, 8
        %s260 = scalar_lea.vmem %s1, %s259
      $region48: #{res_conv_block.1} parent=43 // pred_fallthru
        _
    $region44: #{res_conv_block.1} parent=5 // pred_fallthru
      _
    %p261 = scmp.le.s32.totalorder 1, %s14
    %p262 = scmp.lt.s32.totalorder %s14, 3
    %p263 = pnand %p261, %p262
    %p264 = pneg %p263
    // Predicated region
    $region49: #{res_conv_block.1} parent=5 // pred_check
      _
    $region50: #{res_conv_block.1} parent=5 // pred_check_branch
      %266 = sbr.rel (%p263) target = $region52
    $region51: #{res_conv_block.1} parent=5 // pred_region
      %s267 = ssub.s32 %s14, 1
      %p268 = pneg %p35
      %p269 = pneg %p32
      %p270 = scmp.lt.s32.totalorder %s19, 1
      %s271 = scalar_select %p270, %s19, 1
      %s272 = smul.addr %s271, 4
      %s273 = smul.addr %s272, 8
      %s274 = scalar_lea.vmem %s1, %s273
      %p275 = pneg %p61
      %p276 = pneg %p58
      %p277 = pneg %p82
      %p278 = pneg %p79
      %p279 = pneg %p103
      %p280 = pneg %p100
      %p281 = pneg %p124
      %p282 = pneg %p121
      %p283 = pneg %p145
      %p284 = pneg %p142
      %p285 = pneg %p166
      %p286 = pneg %p163
      %p287 = pneg %p187
      %p288 = pneg %p184
      %p289 = pneg %p213
      %p290 = pneg %p210
      %p291 = scmp.lt.s32.totalorder %s19, 1
      %s292 = scalar_select %p291, %s19, 1
      %s293 = smul.addr %s292, 4
      %s294 = smul.addr %s293, 8
      %s295 = scalar_lea.vmem %s8, %s294
      %p296 = scmp.lt.s32.totalorder %s19, 1
      %s297 = scalar_select %p296, %s19, 1
      %s298 = smul.addr %s297, 4
      %s299 = smul.addr %s298, 8
      %s300 = scalar_lea.vmem %s1, %s299
      %p301 = scmp.lt.s32.totalorder %s19, 1
      %s302 = scalar_select %p301, %s19, 1
      %s303 = smul.addr %s302, 4
      %s304 = smul.addr %s303, 8
      %s305 = scalar_lea.vmem %s8, %s304
      %v306 = vld [vmem:[%s300] sm:$0xff]
      %v307 = vld [vmem:[%s300 + $0x8] sm:$0xff]
      %v308 = vld [vmem:[%s300 + $0x10] sm:$0xff]
      %v309 = vld [vmem:[%s300 + $0x18] sm:$0xff]
      %v310 = vld [vmem:[%s0] sm:$0xff]
      %v311 = vld [vmem:[%s0 + $0x8] sm:$0xff]
      %v312 = vld [vmem:[%s0 + $0x10] sm:$0xff]
      %v313 = vld [vmem:[%s0 + $0x18] sm:$0xff]
      %v314 = vld [vmem:[%s0 + $0x20] sm:$0xff]
      %v315 = vld [vmem:[%s0 + $0x28] sm:$0xff]
      %v316 = vld [vmem:[%s0 + $0x30] sm:$0xff]
      %v317 = vld [vmem:[%s0 + $0x38] sm:$0xff]
      %v318 = vld [vmem:[%s0 + $0x40] sm:$0xff]
      %v319 = vld [vmem:[%s0 + $0x48] sm:$0xff]
      %v320 = vld [vmem:[%s0 + $0x50] sm:$0xff]
      %v321 = vld [vmem:[%s0 + $0x58] sm:$0xff]
      %v322 = vld [vmem:[%s0 + $0x60] sm:$0x7]
      %v323 = vld [vmem:[%s0 + $0x68] sm:$0x7]
      %v324 = vld [vmem:[%s0 + $0x70] sm:$0x7]
      %v325 = vld [vmem:[%s0 + $0x78] sm:$0x7]
      %v326 = vld [vmem:[%s2] sm:$0xff]
      %v327 = vld [vmem:[%s2 + $0x8] sm:$0xff]
      %328 = vrot.lane.b32.xlu0 %v306, 73
      %v329 = vpop.permute.xlu0 %328
      %330 = vrot.lane.b32.xlu0 %v307, 73
      %v331 = vpop.permute.xlu0 %330
      %332 = vrot.lane.b32.xlu0 %v308, 73
      %v333 = vpop.permute.xlu0 %332
      %334 = vrot.lane.b32.xlu0 %v309, 73
      %v335 = vpop.permute.xlu0 %334
      %v336 = vlaneseq
      %v337 = vand.u32 %v336, 127
      %vm338 = vcmp.lt.s32.totalorder %v337, 73
      %v339 = vsel %vm338, %v333, %v335
      %v340 = vsel %vm338, %v331, %v333
      %v341 = vsel %vm338, %v329, %v331
      %v342 = vsel %vm338, %v335, %v329
      %v343 = vperm.slane %v310, 0
      %v344 = vperm.slane %v311, 0
      %v345 = vperm.slane %v312, 0
      %v346 = vperm.slane %v313, 0
      %v347 = vmul.f32 %v342, %v343
      %v348 = vmul.f32 %v341, %v344
      %v349 = vmul.f32 %v340, %v345
      %v350 = vmul.f32 %v339, %v346
      %351 = vrot.lane.b32.xlu0 %v306, 72
      %v352 = vpop.permute.xlu0 %351
      %353 = vrot.lane.b32.xlu0 %v307, 72
      %v354 = vpop.permute.xlu0 %353
      %355 = vrot.lane.b32.xlu0 %v308, 72
      %v356 = vpop.permute.xlu0 %355
      %357 = vrot.lane.b32.xlu0 %v309, 72
      %v358 = vpop.permute.xlu0 %357
      %vm359 = vcmp.lt.s32.totalorder %v337, 72
      %v360 = vsel %vm359, %v356, %v358
      %v361 = vsel %vm359, %v354, %v356
      %v362 = vsel %vm359, %v352, %v354
      %v363 = vsel %vm359, %v358, %v352
      %v364 = vperm.slane %v310, 1
      %v365 = vperm.slane %v311, 1
      %v366 = vperm.slane %v312, 1
      %v367 = vperm.slane %v313, 1
      %v368 = vmul.f32 %v363, %v364
      %v369 = vmul.f32 %v362, %v365
      %v370 = vmul.f32 %v361, %v366
      %v371 = vmul.f32 %v360, %v367
      %372 = vrot.lane.b32.xlu0 %v306, 71
      %v373 = vpop.permute.xlu0 %372
      %374 = vrot.lane.b32.xlu0 %v307, 71
      %v375 = vpop.permute.xlu0 %374
      %376 = vrot.lane.b32.xlu0 %v308, 71
      %v377 = vpop.permute.xlu0 %376
      %378 = vrot.lane.b32.xlu0 %v309, 71
      %v379 = vpop.permute.xlu0 %378
      %vm380 = vcmp.lt.s32.totalorder %v337, 71
      %v381 = vsel %vm380, %v377, %v379
      %v382 = vsel %vm380, %v375, %v377
      %v383 = vsel %vm380, %v373, %v375
      %v384 = vsel %vm380, %v379, %v373
      %v385 = vperm.slane %v310, 2
      %v386 = vperm.slane %v311, 2
      %v387 = vperm.slane %v312, 2
      %v388 = vperm.slane %v313, 2
      %v389 = vmul.f32 %v384, %v385
      %v390 = vmul.f32 %v383, %v386
      %v391 = vmul.f32 %v382, %v387
      %v392 = vmul.f32 %v381, %v388
      %393 = vrot.lane.b32.xlu0 %v306, 65
      %v394 = vpop.permute.xlu0 %393
      %395 = vrot.lane.b32.xlu0 %v307, 65
      %v396 = vpop.permute.xlu0 %395
      %397 = vrot.lane.b32.xlu0 %v308, 65
      %v398 = vpop.permute.xlu0 %397
      %399 = vrot.lane.b32.xlu0 %v309, 65
      %v400 = vpop.permute.xlu0 %399
      %vm401 = vcmp.lt.s32.totalorder %v337, 65
      %v402 = vsel %vm401, %v398, %v400
      %v403 = vsel %vm401, %v396, %v398
      %v404 = vsel %vm401, %v394, %v396
      %v405 = vsel %vm401, %v400, %v394
      %v406 = vperm.slane %v310, 3
      %v407 = vperm.slane %v311, 3
      %v408 = vperm.slane %v312, 3
      %v409 = vperm.slane %v313, 3
      %v410 = vmul.f32 %v405, %v406
      %v411 = vmul.f32 %v404, %v407
      %v412 = vmul.f32 %v403, %v408
      %v413 = vmul.f32 %v402, %v409
      %414 = vrot.lane.b32.xlu0 %v306, 64
      %v415 = vpop.permute.xlu0 %414
      %416 = vrot.lane.b32.xlu0 %v307, 64
      %v417 = vpop.permute.xlu0 %416
      %418 = vrot.lane.b32.xlu0 %v308, 64
      %v419 = vpop.permute.xlu0 %418
      %420 = vrot.lane.b32.xlu0 %v309, 64
      %v421 = vpop.permute.xlu0 %420
      %vm422 = vcmp.lt.s32.totalorder %v337, 64
      %v423 = vsel %vm422, %v419, %v421
      %v424 = vsel %vm422, %v417, %v419
      %v425 = vsel %vm422, %v415, %v417
      %v426 = vsel %vm422, %v421, %v415
      %v427 = vperm.slane %v310, 4
      %v428 = vperm.slane %v311, 4
      %v429 = vperm.slane %v312, 4
      %v430 = vperm.slane %v313, 4
      %v431 = vmul.f32 %v426, %v427
      %v432 = vmul.f32 %v425, %v428
      %v433 = vmul.f32 %v424, %v429
      %v434 = vmul.f32 %v423, %v430
      %435 = vrot.lane.b32.xlu0 %v306, 63
      %v436 = vpop.permute.xlu0 %435
      %437 = vrot.lane.b32.xlu0 %v307, 63
      %v438 = vpop.permute.xlu0 %437
      %439 = vrot.lane.b32.xlu0 %v308, 63
      %v440 = vpop.permute.xlu0 %439
      %441 = vrot.lane.b32.xlu0 %v309, 63
      %v442 = vpop.permute.xlu0 %441
      %vm443 = vcmp.lt.s32.totalorder %v337, 63
      %v444 = vsel %vm443, %v440, %v442
      %v445 = vsel %vm443, %v438, %v440
      %v446 = vsel %vm443, %v436, %v438
      %v447 = vsel %vm443, %v442, %v436
      %v448 = vperm.slane %v310, 5
      %v449 = vperm.slane %v311, 5
      %v450 = vperm.slane %v312, 5
      %v451 = vperm.slane %v313, 5
      %v452 = vmul.f32 %v447, %v448
      %v453 = vmul.f32 %v446, %v449
      %v454 = vmul.f32 %v445, %v450
      %v455 = vmul.f32 %v444, %v451
      %456 = vrot.lane.b32.xlu0 %v306, 57
      %v457 = vpop.permute.xlu0 %456
      %458 = vrot.lane.b32.xlu0 %v307, 57
      %v459 = vpop.permute.xlu0 %458
      %460 = vrot.lane.b32.xlu0 %v308, 57
      %v461 = vpop.permute.xlu0 %460
      %462 = vrot.lane.b32.xlu0 %v309, 57
      %v463 = vpop.permute.xlu0 %462
      %vm464 = vcmp.lt.s32.totalorder %v337, 57
      %v465 = vsel %vm464, %v461, %v463
      %v466 = vsel %vm464, %v459, %v461
      %v467 = vsel %vm464, %v457, %v459
      %v468 = vsel %vm464, %v463, %v457
      %v469 = vperm.slane %v310, 6
      %v470 = vperm.slane %v311, 6
      %v471 = vperm.slane %v312, 6
      %v472 = vperm.slane %v313, 6
      %v473 = vmul.f32 %v468, %v469
      %v474 = vmul.f32 %v467, %v470
      %v475 = vmul.f32 %v466, %v471
      %v476 = vmul.f32 %v465, %v472
      %477 = vrot.lane.b32.xlu0 %v306, 56
      %v478 = vpop.permute.xlu0 %477
      %479 = vrot.lane.b32.xlu0 %v307, 56
      %v480 = vpop.permute.xlu0 %479
      %481 = vrot.lane.b32.xlu0 %v308, 56
      %v482 = vpop.permute.xlu0 %481
      %483 = vrot.lane.b32.xlu0 %v309, 56
      %v484 = vpop.permute.xlu0 %483
      %vm485 = vcmp.lt.s32.totalorder %v337, 56
      %v486 = vsel %vm485, %v482, %v484
      %v487 = vsel %vm485, %v480, %v482
      %v488 = vsel %vm485, %v478, %v480
      %v489 = vsel %vm485, %v484, %v478
      %v490 = vperm.slane %v310, 7
      %v491 = vperm.slane %v311, 7
      %v492 = vperm.slane %v312, 7
      %v493 = vperm.slane %v313, 7
      %v494 = vmul.f32 %v489, %v490
      %v495 = vmul.f32 %v488, %v491
      %v496 = vmul.f32 %v487, %v492
      %v497 = vmul.f32 %v486, %v493
      %498 = vrot.lane.b32.xlu0 %v306, 55
      %v499 = vpop.permute.xlu0 %498
      %500 = vrot.lane.b32.xlu0 %v307, 55
      %v501 = vpop.permute.xlu0 %500
      %502 = vrot.lane.b32.xlu0 %v308, 55
      %v503 = vpop.permute.xlu0 %502
      %504 = vrot.lane.b32.xlu0 %v309, 55
      %v505 = vpop.permute.xlu0 %504
      %vm506 = vcmp.lt.s32.totalorder %v337, 55
      %v507 = vsel %vm506, %v503, %v505
      %v508 = vsel %vm506, %v501, %v503
      %v509 = vsel %vm506, %v499, %v501
      %v510 = vsel %vm506, %v505, %v499
      %v511 = vperm.slane %v314, 0
      %v512 = vperm.slane %v315, 0
      %v513 = vperm.slane %v316, 0
      %v514 = vperm.slane %v317, 0
      %v515 = vmul.f32 %v510, %v511
      %v516 = vmul.f32 %v509, %v512
      %v517 = vmul.f32 %v508, %v513
      %v518 = vmul.f32 %v507, %v514
      %519 = vrot.lane.b32.xlu0 %v306, 9
      %v520 = vpop.permute.xlu0 %519
      %521 = vrot.lane.b32.xlu0 %v307, 9
      %v522 = vpop.permute.xlu0 %521
      %523 = vrot.lane.b32.xlu0 %v308, 9
      %v524 = vpop.permute.xlu0 %523
      %525 = vrot.lane.b32.xlu0 %v309, 9
      %v526 = vpop.permute.xlu0 %525
      %vm527 = vcmp.lt.s32.totalorder %v337, 9
      %v528 = vsel %vm527, %v524, %v526
      %v529 = vsel %vm527, %v522, %v524
      %v530 = vsel %vm527, %v520, %v522
      %v531 = vsel %vm527, %v526, %v520
      %v532 = vperm.slane %v314, 1
      %v533 = vperm.slane %v315, 1
      %v534 = vperm.slane %v316, 1
      %v535 = vperm.slane %v317, 1
      %v536 = vmul.f32 %v531, %v532
      %v537 = vmul.f32 %v530, %v533
      %v538 = vmul.f32 %v529, %v534
      %v539 = vmul.f32 %v528, %v535
      %540 = vrot.lane.b32.xlu0 %v306, 8
      %v541 = vpop.permute.xlu0 %540
      %542 = vrot.lane.b32.xlu0 %v307, 8
      %v543 = vpop.permute.xlu0 %542
      %544 = vrot.lane.b32.xlu0 %v308, 8
      %v545 = vpop.permute.xlu0 %544
      %546 = vrot.lane.b32.xlu0 %v309, 8
      %v547 = vpop.permute.xlu0 %546
      %vm548 = vcmp.lt.s32.totalorder %v337, 8
      %v549 = vsel %vm548, %v545, %v547
      %v550 = vsel %vm548, %v543, %v545
      %v551 = vsel %vm548, %v541, %v543
      %v552 = vsel %vm548, %v547, %v541
      %v553 = vperm.slane %v314, 2
      %v554 = vperm.slane %v315, 2
      %v555 = vperm.slane %v316, 2
      %v556 = vperm.slane %v317, 2
      %v557 = vmul.f32 %v552, %v553
      %v558 = vmul.f32 %v551, %v554
      %v559 = vmul.f32 %v550, %v555
      %v560 = vmul.f32 %v549, %v556
      %561 = vrot.lane.b32.xlu0 %v306, 7
      %v562 = vpop.permute.xlu0 %561
      %563 = vrot.lane.b32.xlu0 %v307, 7
      %v564 = vpop.permute.xlu0 %563
      %565 = vrot.lane.b32.xlu0 %v308, 7
      %v566 = vpop.permute.xlu0 %565
      %567 = vrot.lane.b32.xlu0 %v309, 7
      %v568 = vpop.permute.xlu0 %567
      %vm569 = vcmp.lt.s32.totalorder %v337, 7
      %v570 = vsel %vm569, %v566, %v568
      %v571 = vsel %vm569, %v564, %v566
      %v572 = vsel %vm569, %v562, %v564
      %v573 = vsel %vm569, %v568, %v562
      %v574 = vperm.slane %v314, 3
      %v575 = vperm.slane %v315, 3
      %v576 = vperm.slane %v316, 3
      %v577 = vperm.slane %v317, 3
      %v578 = vmul.f32 %v573, %v574
      %v579 = vmul.f32 %v572, %v575
      %v580 = vmul.f32 %v571, %v576
      %v581 = vmul.f32 %v570, %v577
      %582 = vrot.lane.b32.xlu0 %v306, 1
      %v583 = vpop.permute.xlu0 %582
      %584 = vrot.lane.b32.xlu0 %v307, 1
      %v585 = vpop.permute.xlu0 %584
      %586 = vrot.lane.b32.xlu0 %v308, 1
      %v587 = vpop.permute.xlu0 %586
      %588 = vrot.lane.b32.xlu0 %v309, 1
      %v589 = vpop.permute.xlu0 %588
      %vm590 = vcmp.lt.s32.totalorder %v337, 1
      %v591 = vsel %vm590, %v587, %v589
      %v592 = vsel %vm590, %v585, %v587
      %v593 = vsel %vm590, %v583, %v585
      %v594 = vsel %vm590, %v589, %v583
      %v595 = vperm.slane %v314, 4
      %v596 = vperm.slane %v315, 4
      %v597 = vperm.slane %v316, 4
      %v598 = vperm.slane %v317, 4
      %v599 = vmul.f32 %v594, %v595
      %v600 = vmul.f32 %v593, %v596
      %v601 = vmul.f32 %v592, %v597
      %v602 = vmul.f32 %v591, %v598
      %603 = vrot.lane.b32.xlu0 %v306, 127
      %v604 = vpop.permute.xlu0 %603
      %605 = vrot.lane.b32.xlu0 %v307, 127
      %v606 = vpop.permute.xlu0 %605
      %607 = vrot.lane.b32.xlu0 %v308, 127
      %v608 = vpop.permute.xlu0 %607
      %609 = vrot.lane.b32.xlu0 %v309, 127
      %v610 = vpop.permute.xlu0 %609
      %vm611 = vcmp.lt.s32.totalorder %v337, 127
      %v612 = vsel %vm611, %v608, %v610
      %v613 = vsel %vm611, %v606, %v608
      %v614 = vsel %vm611, %v604, %v606
      %v615 = vsel %vm611, %v610, %v604
      %v616 = vperm.slane %v314, 6
      %v617 = vperm.slane %v315, 6
      %v618 = vperm.slane %v316, 6
      %v619 = vperm.slane %v317, 6
      %v620 = vmul.f32 %v614, %v616
      %v621 = vmul.f32 %v613, %v617
      %v622 = vmul.f32 %v612, %v618
      %v623 = vmul.f32 %v615, %v619
      %624 = vrot.lane.b32.xlu0 %v306, 121
      %v625 = vpop.permute.xlu0 %624
      %626 = vrot.lane.b32.xlu0 %v307, 121
      %v627 = vpop.permute.xlu0 %626
      %628 = vrot.lane.b32.xlu0 %v308, 121
      %v629 = vpop.permute.xlu0 %628
      %630 = vrot.lane.b32.xlu0 %v309, 121
      %v631 = vpop.permute.xlu0 %630
      %vm632 = vcmp.lt.s32.totalorder %v337, 121
      %v633 = vsel %vm632, %v629, %v631
      %v634 = vsel %vm632, %v627, %v629
      %v635 = vsel %vm632, %v625, %v627
      %v636 = vsel %vm632, %v631, %v625
      %v637 = vperm.slane %v314, 7
      %v638 = vperm.slane %v315, 7
      %v639 = vperm.slane %v316, 7
      %v640 = vperm.slane %v317, 7
      %v641 = vmul.f32 %v635, %v637
      %v642 = vmul.f32 %v634, %v638
      %v643 = vmul.f32 %v633, %v639
      %v644 = vmul.f32 %v636, %v640
      %645 = vrot.lane.b32.xlu0 %v306, 120
      %v646 = vpop.permute.xlu0 %645
      %647 = vrot.lane.b32.xlu0 %v307, 120
      %v648 = vpop.permute.xlu0 %647
      %649 = vrot.lane.b32.xlu0 %v308, 120
      %v650 = vpop.permute.xlu0 %649
      %651 = vrot.lane.b32.xlu0 %v309, 120
      %v652 = vpop.permute.xlu0 %651
      %vm653 = vcmp.lt.s32.totalorder %v337, 120
      %v654 = vsel %vm653, %v650, %v652
      %v655 = vsel %vm653, %v648, %v650
      %v656 = vsel %vm653, %v646, %v648
      %v657 = vsel %vm653, %v652, %v646
      %v658 = vperm.slane %v318, 0
      %v659 = vperm.slane %v319, 0
      %v660 = vperm.slane %v320, 0
      %v661 = vperm.slane %v321, 0
      %v662 = vmul.f32 %v656, %v658
      %v663 = vmul.f32 %v655, %v659
      %v664 = vmul.f32 %v654, %v660
      %v665 = vmul.f32 %v657, %v661
      %666 = vrot.lane.b32.xlu0 %v306, 119
      %v667 = vpop.permute.xlu0 %666
      %668 = vrot.lane.b32.xlu0 %v307, 119
      %v669 = vpop.permute.xlu0 %668
      %670 = vrot.lane.b32.xlu0 %v308, 119
      %v671 = vpop.permute.xlu0 %670
      %672 = vrot.lane.b32.xlu0 %v309, 119
      %v673 = vpop.permute.xlu0 %672
      %vm674 = vcmp.lt.s32.totalorder %v337, 119
      %v675 = vsel %vm674, %v671, %v673
      %v676 = vsel %vm674, %v669, %v671
      %v677 = vsel %vm674, %v667, %v669
      %v678 = vsel %vm674, %v673, %v667
      %v679 = vperm.slane %v318, 1
      %v680 = vperm.slane %v319, 1
      %v681 = vperm.slane %v320, 1
      %v682 = vperm.slane %v321, 1
      %v683 = vmul.f32 %v677, %v679
      %v684 = vmul.f32 %v676, %v680
      %v685 = vmul.f32 %v675, %v681
      %v686 = vmul.f32 %v678, %v682
      %v687 = vperm.slane %v318, 2
      %v688 = vperm.slane %v319, 2
      %v689 = vperm.slane %v320, 2
      %v690 = vperm.slane %v321, 2
      %v691 = vmul.f32 %v341, %v687
      %v692 = vmul.f32 %v340, %v688
      %v693 = vmul.f32 %v339, %v689
      %v694 = vmul.f32 %v342, %v690
      %v695 = vperm.slane %v318, 3
      %v696 = vperm.slane %v319, 3
      %v697 = vperm.slane %v320, 3
      %v698 = vperm.slane %v321, 3
      %v699 = vmul.f32 %v362, %v695
      %v700 = vmul.f32 %v361, %v696
      %v701 = vmul.f32 %v360, %v697
      %v702 = vmul.f32 %v363, %v698
      %v703 = vperm.slane %v318, 4
      %v704 = vperm.slane %v319, 4
      %v705 = vperm.slane %v320, 4
      %v706 = vperm.slane %v321, 4
      %v707 = vmul.f32 %v383, %v703
      %v708 = vmul.f32 %v382, %v704
      %v709 = vmul.f32 %v381, %v705
      %v710 = vmul.f32 %v384, %v706
      %v711 = vperm.slane %v318, 5
      %v712 = vperm.slane %v319, 5
      %v713 = vperm.slane %v320, 5
      %v714 = vperm.slane %v321, 5
      %v715 = vmul.f32 %v404, %v711
      %v716 = vmul.f32 %v403, %v712
      %v717 = vmul.f32 %v402, %v713
      %v718 = vmul.f32 %v405, %v714
      %v719 = vperm.slane %v318, 6
      %v720 = vperm.slane %v319, 6
      %v721 = vperm.slane %v320, 6
      %v722 = vperm.slane %v321, 6
      %v723 = vmul.f32 %v425, %v719
      %v724 = vmul.f32 %v424, %v720
      %v725 = vmul.f32 %v423, %v721
      %v726 = vmul.f32 %v426, %v722
      %v727 = vperm.slane %v318, 7
      %v728 = vperm.slane %v319, 7
      %v729 = vperm.slane %v320, 7
      %v730 = vperm.slane %v321, 7
      %v731 = vmul.f32 %v446, %v727
      %v732 = vmul.f32 %v445, %v728
      %v733 = vmul.f32 %v444, %v729
      %v734 = vmul.f32 %v447, %v730
      %v735 = vperm.slane %v322, 0
      %v736 = vperm.slane %v323, 0
      %v737 = vperm.slane %v324, 0
      %v738 = vperm.slane %v325, 0
      %v739 = vmul.f32 %v467, %v735
      %v740 = vmul.f32 %v466, %v736
      %v741 = vmul.f32 %v465, %v737
      %v742 = vmul.f32 %v468, %v738
      %v743 = vperm.slane %v322, 1
      %v744 = vperm.slane %v323, 1
      %v745 = vperm.slane %v324, 1
      %v746 = vperm.slane %v325, 1
      %v747 = vmul.f32 %v488, %v743
      %v748 = vmul.f32 %v487, %v744
      %v749 = vmul.f32 %v486, %v745
      %v750 = vmul.f32 %v489, %v746
      %v751 = vperm.slane %v322, 2
      %v752 = vperm.slane %v323, 2
      %v753 = vperm.slane %v324, 2
      %v754 = vperm.slane %v325, 2
      %v755 = vmul.f32 %v509, %v751
      %v756 = vmul.f32 %v508, %v752
      %v757 = vmul.f32 %v507, %v753
      %v758 = vmul.f32 %v510, %v754
      %v759 = vld [vmem:[%s3] sm:$0xff]
      %761 = vset.pattern.permute.xlu0 0
      %762 = vperm.xlu0 %761, %v759
      %v763 = vpop.permute.xlu0 %762
      %vm765 = vcmask 719872
      %v767 = vsel %vm765, %v327, 0
      %769 = vmatpush.msra.mxu0 %v641
      %770 = vmatpush.msra.mxu0 %v620
      %771 = vmatpush.msra.mxu0 %v306
      %772 = vmatpush.msra.mxu0 %v599
      %773 = vmatpush.msra.mxu0 %v578
      %774 = vmatpush.msra.mxu0 %v557
      %775 = vmatpush.msra.mxu0 %v536
      %776 = vmatpush.msra.mxu0 %v515
      %777 = vmatpush.msra.mxu0 %v494
      %778 = vmatpush.msra.mxu0 %v473
      %779 = vmatpush.msra.mxu0 %v452
      %780 = vmatpush.msra.mxu0 %v431
      %781 = vmatpush.msra.mxu0 %v410
      %782 = vmatpush.msra.mxu0 %v389
      %783 = vmatpush.msra.mxu0 %v368
      %784 = vmatpush.msra.mxu0 %v347
      %785 = vmatmul.f32.gmra.mxu0 %v326
      %v786 = vpop.f32.mrf.mxu0
      %v787 = vadd.f32 %v763, %v786
      %788 = vdwg.mxu0
      %789 = vmatpush.msra.mxu0 0.0
      %790 = vmatpush.msra.mxu0 0.0
      %791 = vmatpush.msra.mxu0 0.0
      %792 = vmatpush.msra.mxu0 0.0
      %793 = vmatpush.msra.mxu0 0.0
      %794 = vmatpush.msra.mxu0 %v755
      %795 = vmatpush.msra.mxu0 %v747
      %796 = vmatpush.msra.mxu0 %v739
      %797 = vmatpush.msra.mxu0 %v731
      %798 = vmatpush.msra.mxu0 %v723
      %799 = vmatpush.msra.mxu0 %v715
      %800 = vmatpush.msra.mxu0 %v707
      %801 = vmatpush.msra.mxu0 %v699
      %802 = vmatpush.msra.mxu0 %v691
      %803 = vmatpush.msra.mxu0 %v683
      %804 = vmatpush.msra.mxu0 %v662
      %805 = vmatmul.f32.gmra.mxu0 %v767
      %v806 = vpop.f32.mrf.mxu0
      %v807 = vadd.f32 %v787, %v806
      %808 = vdwg.mxu0
      %809 = vmatpush.msra.mxu0 %v642
      %810 = vmatpush.msra.mxu0 %v621
      %811 = vmatpush.msra.mxu0 %v307
      %812 = vmatpush.msra.mxu0 %v600
      %813 = vmatpush.msra.mxu0 %v579
      %814 = vmatpush.msra.mxu0 %v558
      %815 = vmatpush.msra.mxu0 %v537
      %816 = vmatpush.msra.mxu0 %v516
      %817 = vmatpush.msra.mxu0 %v495
      %818 = vmatpush.msra.mxu0 %v474
      %819 = vmatpush.msra.mxu0 %v453
      %820 = vmatpush.msra.mxu0 %v432
      %821 = vmatpush.msra.mxu0 %v411
      %822 = vmatpush.msra.mxu0 %v390
      %823 = vmatpush.msra.mxu0 %v369
      %824 = vmatpush.msra.mxu0 %v348
      %825 = vmatmul.f32.gmra.mxu0 %v326
      %v826 = vpop.f32.mrf.mxu0
      %v827 = vadd.f32 %v763, %v826
      %828 = vdwg.mxu0
      %829 = vmatpush.msra.mxu0 0.0
      %830 = vmatpush.msra.mxu0 0.0
      %831 = vmatpush.msra.mxu0 0.0
      %832 = vmatpush.msra.mxu0 0.0
      %833 = vmatpush.msra.mxu0 0.0
      %834 = vmatpush.msra.mxu0 %v756
      %835 = vmatpush.msra.mxu0 %v748
      %836 = vmatpush.msra.mxu0 %v740
      %837 = vmatpush.msra.mxu0 %v732
      %838 = vmatpush.msra.mxu0 %v724
      %839 = vmatpush.msra.mxu0 %v716
      %840 = vmatpush.msra.mxu0 %v708
      %841 = vmatpush.msra.mxu0 %v700
      %842 = vmatpush.msra.mxu0 %v692
      %843 = vmatpush.msra.mxu0 %v684
      %844 = vmatpush.msra.mxu0 %v663
      %845 = vmatmul.f32.gmra.mxu0 %v767
      %v846 = vpop.f32.mrf.mxu0
      %v847 = vadd.f32 %v827, %v846
      %848 = vdwg.mxu0
      %849 = vmatpush.msra.mxu0 %v643
      %850 = vmatpush.msra.mxu0 %v622
      %851 = vmatpush.msra.mxu0 %v308
      %852 = vmatpush.msra.mxu0 %v601
      %853 = vmatpush.msra.mxu0 %v580
      %854 = vmatpush.msra.mxu0 %v559
      %855 = vmatpush.msra.mxu0 %v538
      %856 = vmatpush.msra.mxu0 %v517
      %857 = vmatpush.msra.mxu0 %v496
      %858 = vmatpush.msra.mxu0 %v475
      %859 = vmatpush.msra.mxu0 %v454
      %860 = vmatpush.msra.mxu0 %v433
      %861 = vmatpush.msra.mxu0 %v412
      %862 = vmatpush.msra.mxu0 %v391
      %863 = vmatpush.msra.mxu0 %v370
      %864 = vmatpush.msra.mxu0 %v349
      %865 = vmatmul.f32.gmra.mxu0 %v326
      %v866 = vpop.f32.mrf.mxu0
      %v867 = vadd.f32 %v763, %v866
      %868 = vdwg.mxu0
      %869 = vmatpush.msra.mxu0 0.0
      %870 = vmatpush.msra.mxu0 0.0
      %871 = vmatpush.msra.mxu0 0.0
      %872 = vmatpush.msra.mxu0 0.0
      %873 = vmatpush.msra.mxu0 0.0
      %874 = vmatpush.msra.mxu0 %v757
      %875 = vmatpush.msra.mxu0 %v749
      %876 = vmatpush.msra.mxu0 %v741
      %877 = vmatpush.msra.mxu0 %v733
      %878 = vmatpush.msra.mxu0 %v725
      %879 = vmatpush.msra.mxu0 %v717
      %880 = vmatpush.msra.mxu0 %v709
      %881 = vmatpush.msra.mxu0 %v701
      %882 = vmatpush.msra.mxu0 %v693
      %883 = vmatpush.msra.mxu0 %v685
      %884 = vmatpush.msra.mxu0 %v664
      %885 = vmatmul.f32.gmra.mxu0 %v767
      %v886 = vpop.f32.mrf.mxu0
      %v887 = vadd.f32 %v867, %v886
      %888 = vdwg.mxu0
      %889 = vmatpush.msra.mxu0 %v644
      %890 = vmatpush.msra.mxu0 %v623
      %891 = vmatpush.msra.mxu0 %v309
      %892 = vmatpush.msra.mxu0 %v602
      %893 = vmatpush.msra.mxu0 %v581
      %894 = vmatpush.msra.mxu0 %v560
      %895 = vmatpush.msra.mxu0 %v539
      %896 = vmatpush.msra.mxu0 %v518
      %897 = vmatpush.msra.mxu0 %v497
      %898 = vmatpush.msra.mxu0 %v476
      %899 = vmatpush.msra.mxu0 %v455
      %900 = vmatpush.msra.mxu0 %v434
      %901 = vmatpush.msra.mxu0 %v413
      %902 = vmatpush.msra.mxu0 %v392
      %903 = vmatpush.msra.mxu0 %v371
      %904 = vmatpush.msra.mxu0 %v350
      %905 = vmatmul.f32.gmra.mxu0 %v326
      %v906 = vpop.f32.mrf.mxu0
      %v907 = vadd.f32 %v763, %v906
      %908 = vdwg.mxu0
      %909 = vmatpush.msra.mxu0 0.0
      %910 = vmatpush.msra.mxu0 0.0
      %911 = vmatpush.msra.mxu0 0.0
      %912 = vmatpush.msra.mxu0 0.0
      %913 = vmatpush.msra.mxu0 0.0
      %914 = vmatpush.msra.mxu0 %v758
      %915 = vmatpush.msra.mxu0 %v750
      %916 = vmatpush.msra.mxu0 %v742
      %917 = vmatpush.msra.mxu0 %v734
      %918 = vmatpush.msra.mxu0 %v726
      %919 = vmatpush.msra.mxu0 %v718
      %920 = vmatpush.msra.mxu0 %v710
      %921 = vmatpush.msra.mxu0 %v702
      %922 = vmatpush.msra.mxu0 %v694
      %923 = vmatpush.msra.mxu0 %v686
      %924 = vmatpush.msra.mxu0 %v665
      %925 = vmatmul.f32.gmra.mxu0 %v767
      %v926 = vpop.f32.mrf.mxu0
      %v927 = vadd.f32 %v907, %v926
      %928 = vdwg.mxu0
      %v929 = vadd.f32 %v807, %v847
      %v930 = vadd.f32 %v929, %v887
      %v931 = vadd.f32 %v930, %v927
      %932 = vadd.xlane.f32.xlu0 %v931
      %v933 = vpop.xlane.xlu0 %932
      %v934 = vmul.f32 %v933, 0.001953125
      %v935 = vmul.f32 %v807, %v807
      %v936 = vmul.f32 %v847, %v847
      %v937 = vmul.f32 %v887, %v887
      %v938 = vmul.f32 %v927, %v927
      %v939 = vadd.f32 %v935, %v936
      %v940 = vadd.f32 %v939, %v937
      %v941 = vadd.f32 %v940, %v938
      %942 = vadd.xlane.f32.xlu0 %v941
      %v943 = vpop.xlane.xlu0 %942
      %v944 = vmul.f32 %v943, 0.001953125
      %v945 = vmul.f32 %v934, %v934
      %v946 = vsub.f32 %v944, %v945
      %v947 = vsub.f32 %v807, %v934
      %v948 = vsub.f32 %v847, %v934
      %v949 = vsub.f32 %v887, %v934
      %v950 = vsub.f32 %v927, %v934
      %v951 = vmax.f32 %v946, 0.0
      %v952 = vadd.f32 %v951, 1e-05
      %v953 = vrsqrt.pop %v952
      %v954 = vmul.f32 %v953, %v952
      %v955 = vmul.f32 %v954, %v953
      %v956 = vmul.f32 0.5, %v955
      %v957 = vsub.f32 1.5, %v956
      %v958 = vmul.f32 %v953, %v957
      %vm959 = vweird.f32 %v952
      %vm960 = vweird.f32 %v953
      %vm961 = vmor %vm959, %vm960
      %v962 = vsel %vm961, %v953, %v958
      %v963 = vmul.f32 %v947, %v962
      %v964 = vmul.f32 %v948, %v962
      %v965 = vmul.f32 %v949, %v962
      %v966 = vmul.f32 %v950, %v962
      %vm967 = vcmp.ge.f32.partialorder %v963, 0.0
      %vm968 = vcmp.ge.f32.partialorder %v964, 0.0
      %vm969 = vcmp.ge.f32.partialorder %v965, 0.0
      %vm970 = vcmp.ge.f32.partialorder %v966, 0.0
      %v971 = vmul.f32 %v963, 0.01
      %v972 = vmul.f32 %v964, 0.01
      %v973 = vmul.f32 %v965, 0.01
      %v974 = vmul.f32 %v966, 0.01
      %v975 = vsel %vm967, %v963, %v971
      %v976 = vsel %vm968, %v964, %v972
      %v977 = vsel %vm969, %v965, %v973
      %v978 = vsel %vm970, %v966, %v974
      %v979 = vld [vmem:[%s4] sm:$0xff]
      %v980 = vld [vmem:[%s4 + $0x8] sm:$0xff]
      %981 = vrot.lane.b32.xlu0 %v975, 73
      %v982 = vpop.permute.xlu0 %981
      %983 = vrot.lane.b32.xlu0 %v976, 73
      %v984 = vpop.permute.xlu0 %983
      %985 = vrot.lane.b32.xlu0 %v977, 73
      %v986 = vpop.permute.xlu0 %985
      %987 = vrot.lane.b32.xlu0 %v978, 73
      %v988 = vpop.permute.xlu0 %987
      %v989 = vsel %vm338, %v986, %v988
      %v990 = vsel %vm338, %v984, %v986
      %v991 = vsel %vm338, %v982, %v984
      %v992 = vsel %vm338, %v988, %v982
      %v993 = vmul.f32 %v992, %v343
      %v994 = vmul.f32 %v991, %v344
      %v995 = vmul.f32 %v990, %v345
      %v996 = vmul.f32 %v989, %v346
      %997 = vrot.lane.b32.xlu0 %v975, 72
      %v998 = vpop.permute.xlu0 %997
      %999 = vrot.lane.b32.xlu0 %v976, 72
      %v1000 = vpop.permute.xlu0 %999
      %1001 = vrot.lane.b32.xlu0 %v977, 72
      %v1002 = vpop.permute.xlu0 %1001
      %1003 = vrot.lane.b32.xlu0 %v978, 72
      %v1004 = vpop.permute.xlu0 %1003
      %v1005 = vsel %vm359, %v1002, %v1004
      %v1006 = vsel %vm359, %v1000, %v1002
      %v1007 = vsel %vm359, %v998, %v1000
      %v1008 = vsel %vm359, %v1004, %v998
      %v1009 = vmul.f32 %v1008, %v364
      %v1010 = vmul.f32 %v1007, %v365
      %v1011 = vmul.f32 %v1006, %v366
      %v1012 = vmul.f32 %v1005, %v367
      %1013 = vrot.lane.b32.xlu0 %v975, 71
      %v1014 = vpop.permute.xlu0 %1013
      %1015 = vrot.lane.b32.xlu0 %v976, 71
      %v1016 = vpop.permute.xlu0 %1015
      %1017 = vrot.lane.b32.xlu0 %v977, 71
      %v1018 = vpop.permute.xlu0 %1017
      %1019 = vrot.lane.b32.xlu0 %v978, 71
      %v1020 = vpop.permute.xlu0 %1019
      %v1021 = vsel %vm380, %v1018, %v1020
      %v1022 = vsel %vm380, %v1016, %v1018
      %v1023 = vsel %vm380, %v1014, %v1016
      %v1024 = vsel %vm380, %v1020, %v1014
      %v1025 = vmul.f32 %v1024, %v385
      %v1026 = vmul.f32 %v1023, %v386
      %v1027 = vmul.f32 %v1022, %v387
      %v1028 = vmul.f32 %v1021, %v388
      %1029 = vrot.lane.b32.xlu0 %v975, 65
      %v1030 = vpop.permute.xlu0 %1029
      %1031 = vrot.lane.b32.xlu0 %v976, 65
      %v1032 = vpop.permute.xlu0 %1031
      %1033 = vrot.lane.b32.xlu0 %v977, 65
      %v1034 = vpop.permute.xlu0 %1033
      %1035 = vrot.lane.b32.xlu0 %v978, 65
      %v1036 = vpop.permute.xlu0 %1035
      %v1037 = vsel %vm401, %v1034, %v1036
      %v1038 = vsel %vm401, %v1032, %v1034
      %v1039 = vsel %vm401, %v1030, %v1032
      %v1040 = vsel %vm401, %v1036, %v1030
      %v1041 = vmul.f32 %v1040, %v406
      %v1042 = vmul.f32 %v1039, %v407
      %v1043 = vmul.f32 %v1038, %v408
      %v1044 = vmul.f32 %v1037, %v409
      %1045 = vrot.lane.b32.xlu0 %v975, 64
      %v1046 = vpop.permute.xlu0 %1045
      %1047 = vrot.lane.b32.xlu0 %v976, 64
      %v1048 = vpop.permute.xlu0 %1047
      %1049 = vrot.lane.b32.xlu0 %v977, 64
      %v1050 = vpop.permute.xlu0 %1049
      %1051 = vrot.lane.b32.xlu0 %v978, 64
      %v1052 = vpop.permute.xlu0 %1051
      %v1053 = vsel %vm422, %v1050, %v1052
      %v1054 = vsel %vm422, %v1048, %v1050
      %v1055 = vsel %vm422, %v1046, %v1048
      %v1056 = vsel %vm422, %v1052, %v1046
      %v1057 = vmul.f32 %v1056, %v427
      %v1058 = vmul.f32 %v1055, %v428
      %v1059 = vmul.f32 %v1054, %v429
      %v1060 = vmul.f32 %v1053, %v430
      %1061 = vrot.lane.b32.xlu0 %v975, 63
      %v1062 = vpop.permute.xlu0 %1061
      %1063 = vrot.lane.b32.xlu0 %v976, 63
      %v1064 = vpop.permute.xlu0 %1063
      %1065 = vrot.lane.b32.xlu0 %v977, 63
      %v1066 = vpop.permute.xlu0 %1065
      %1067 = vrot.lane.b32.xlu0 %v978, 63
      %v1068 = vpop.permute.xlu0 %1067
      %v1069 = vsel %vm443, %v1066, %v1068
      %v1070 = vsel %vm443, %v1064, %v1066
      %v1071 = vsel %vm443, %v1062, %v1064
      %v1072 = vsel %vm443, %v1068, %v1062
      %v1073 = vmul.f32 %v1072, %v448
      %v1074 = vmul.f32 %v1071, %v449
      %v1075 = vmul.f32 %v1070, %v450
      %v1076 = vmul.f32 %v1069, %v451
      %1077 = vrot.lane.b32.xlu0 %v975, 57
      %v1078 = vpop.permute.xlu0 %1077
      %1079 = vrot.lane.b32.xlu0 %v976, 57
      %v1080 = vpop.permute.xlu0 %1079
      %1081 = vrot.lane.b32.xlu0 %v977, 57
      %v1082 = vpop.permute.xlu0 %1081
      %1083 = vrot.lane.b32.xlu0 %v978, 57
      %v1084 = vpop.permute.xlu0 %1083
      %v1085 = vsel %vm464, %v1082, %v1084
      %v1086 = vsel %vm464, %v1080, %v1082
      %v1087 = vsel %vm464, %v1078, %v1080
      %v1088 = vsel %vm464, %v1084, %v1078
      %v1089 = vmul.f32 %v1088, %v469
      %v1090 = vmul.f32 %v1087, %v470
      %v1091 = vmul.f32 %v1086, %v471
      %v1092 = vmul.f32 %v1085, %v472
      %1093 = vrot.lane.b32.xlu0 %v975, 56
      %v1094 = vpop.permute.xlu0 %1093
      %1095 = vrot.lane.b32.xlu0 %v976, 56
      %v1096 = vpop.permute.xlu0 %1095
      %1097 = vrot.lane.b32.xlu0 %v977, 56
      %v1098 = vpop.permute.xlu0 %1097
      %1099 = vrot.lane.b32.xlu0 %v978, 56
      %v1100 = vpop.permute.xlu0 %1099
      %v1101 = vsel %vm485, %v1098, %v1100
      %v1102 = vsel %vm485, %v1096, %v1098
      %v1103 = vsel %vm485, %v1094, %v1096
      %v1104 = vsel %vm485, %v1100, %v1094
      %v1105 = vmul.f32 %v1104, %v490
      %v1106 = vmul.f32 %v1103, %v491
      %v1107 = vmul.f32 %v1102, %v492
      %v1108 = vmul.f32 %v1101, %v493
      %1109 = vrot.lane.b32.xlu0 %v975, 55
      %v1110 = vpop.permute.xlu0 %1109
      %1111 = vrot.lane.b32.xlu0 %v976, 55
      %v1112 = vpop.permute.xlu0 %1111
      %1113 = vrot.lane.b32.xlu0 %v977, 55
      %v1114 = vpop.permute.xlu0 %1113
      %1115 = vrot.lane.b32.xlu0 %v978, 55
      %v1116 = vpop.permute.xlu0 %1115
      %v1117 = vsel %vm506, %v1114, %v1116
      %v1118 = vsel %vm506, %v1112, %v1114
      %v1119 = vsel %vm506, %v1110, %v1112
      %v1120 = vsel %vm506, %v1116, %v1110
      %v1121 = vmul.f32 %v1120, %v511
      %v1122 = vmul.f32 %v1119, %v512
      %v1123 = vmul.f32 %v1118, %v513
      %v1124 = vmul.f32 %v1117, %v514
      %1125 = vrot.lane.b32.xlu0 %v975, 9
      %v1126 = vpop.permute.xlu0 %1125
      %1127 = vrot.lane.b32.xlu0 %v976, 9
      %v1128 = vpop.permute.xlu0 %1127
      %1129 = vrot.lane.b32.xlu0 %v977, 9
      %v1130 = vpop.permute.xlu0 %1129
      %1131 = vrot.lane.b32.xlu0 %v978, 9
      %v1132 = vpop.permute.xlu0 %1131
      %v1133 = vsel %vm527, %v1130, %v1132
      %v1134 = vsel %vm527, %v1128, %v1130
      %v1135 = vsel %vm527, %v1126, %v1128
      %v1136 = vsel %vm527, %v1132, %v1126
      %v1137 = vmul.f32 %v1136, %v532
      %v1138 = vmul.f32 %v1135, %v533
      %v1139 = vmul.f32 %v1134, %v534
      %v1140 = vmul.f32 %v1133, %v535
      %1141 = vrot.lane.b32.xlu0 %v975, 8
      %v1142 = vpop.permute.xlu0 %1141
      %1143 = vrot.lane.b32.xlu0 %v976, 8
      %v1144 = vpop.permute.xlu0 %1143
      %1145 = vrot.lane.b32.xlu0 %v977, 8
      %v1146 = vpop.permute.xlu0 %1145
      %1147 = vrot.lane.b32.xlu0 %v978, 8
      %v1148 = vpop.permute.xlu0 %1147
      %v1149 = vsel %vm548, %v1146, %v1148
      %v1150 = vsel %vm548, %v1144, %v1146
      %v1151 = vsel %vm548, %v1142, %v1144
      %v1152 = vsel %vm548, %v1148, %v1142
      %v1153 = vmul.f32 %v1152, %v553
      %v1154 = vmul.f32 %v1151, %v554
      %v1155 = vmul.f32 %v1150, %v555
      %v1156 = vmul.f32 %v1149, %v556
      %1157 = vrot.lane.b32.xlu0 %v975, 7
      %v1158 = vpop.permute.xlu0 %1157
      %1159 = vrot.lane.b32.xlu0 %v976, 7
      %v1160 = vpop.permute.xlu0 %1159
      %1161 = vrot.lane.b32.xlu0 %v977, 7
      %v1162 = vpop.permute.xlu0 %1161
      %1163 = vrot.lane.b32.xlu0 %v978, 7
      %v1164 = vpop.permute.xlu0 %1163
      %v1165 = vsel %vm569, %v1162, %v1164
      %v1166 = vsel %vm569, %v1160, %v1162
      %v1167 = vsel %vm569, %v1158, %v1160
      %v1168 = vsel %vm569, %v1164, %v1158
      %v1169 = vmul.f32 %v1168, %v574
      %v1170 = vmul.f32 %v1167, %v575
      %v1171 = vmul.f32 %v1166, %v576
      %v1172 = vmul.f32 %v1165, %v577
      %1173 = vrot.lane.b32.xlu0 %v975, 1
      %v1174 = vpop.permute.xlu0 %1173
      %1175 = vrot.lane.b32.xlu0 %v976, 1
      %v1176 = vpop.permute.xlu0 %1175
      %1177 = vrot.lane.b32.xlu0 %v977, 1
      %v1178 = vpop.permute.xlu0 %1177
      %1179 = vrot.lane.b32.xlu0 %v978, 1
      %v1180 = vpop.permute.xlu0 %1179
      %v1181 = vsel %vm590, %v1178, %v1180
      %v1182 = vsel %vm590, %v1176, %v1178
      %v1183 = vsel %vm590, %v1174, %v1176
      %v1184 = vsel %vm590, %v1180, %v1174
      %v1185 = vmul.f32 %v1184, %v595
      %v1186 = vmul.f32 %v1183, %v596
      %v1187 = vmul.f32 %v1182, %v597
      %v1188 = vmul.f32 %v1181, %v598
      %1189 = vrot.lane.b32.xlu0 %v975, 127
      %v1190 = vpop.permute.xlu0 %1189
      %1191 = vrot.lane.b32.xlu0 %v976, 127
      %v1192 = vpop.permute.xlu0 %1191
      %1193 = vrot.lane.b32.xlu0 %v977, 127
      %v1194 = vpop.permute.xlu0 %1193
      %1195 = vrot.lane.b32.xlu0 %v978, 127
      %v1196 = vpop.permute.xlu0 %1195
      %v1197 = vsel %vm611, %v1194, %v1196
      %v1198 = vsel %vm611, %v1192, %v1194
      %v1199 = vsel %vm611, %v1190, %v1192
      %v1200 = vsel %vm611, %v1196, %v1190
      %v1201 = vmul.f32 %v1199, %v616
      %v1202 = vmul.f32 %v1198, %v617
      %v1203 = vmul.f32 %v1197, %v618
      %v1204 = vmul.f32 %v1200, %v619
      %1205 = vrot.lane.b32.xlu0 %v975, 121
      %v1206 = vpop.permute.xlu0 %1205
      %1207 = vrot.lane.b32.xlu0 %v976, 121
      %v1208 = vpop.permute.xlu0 %1207
      %1209 = vrot.lane.b32.xlu0 %v977, 121
      %v1210 = vpop.permute.xlu0 %1209
      %1211 = vrot.lane.b32.xlu0 %v978, 121
      %v1212 = vpop.permute.xlu0 %1211
      %v1213 = vsel %vm632, %v1210, %v1212
      %v1214 = vsel %vm632, %v1208, %v1210
      %v1215 = vsel %vm632, %v1206, %v1208
      %v1216 = vsel %vm632, %v1212, %v1206
      %v1217 = vmul.f32 %v1215, %v637
      %v1218 = vmul.f32 %v1214, %v638
      %v1219 = vmul.f32 %v1213, %v639
      %v1220 = vmul.f32 %v1216, %v640
      %1221 = vrot.lane.b32.xlu0 %v975, 120
      %v1222 = vpop.permute.xlu0 %1221
      %1223 = vrot.lane.b32.xlu0 %v976, 120
      %v1224 = vpop.permute.xlu0 %1223
      %1225 = vrot.lane.b32.xlu0 %v977, 120
      %v1226 = vpop.permute.xlu0 %1225
      %1227 = vrot.lane.b32.xlu0 %v978, 120
      %v1228 = vpop.permute.xlu0 %1227
      %v1229 = vsel %vm653, %v1226, %v1228
      %v1230 = vsel %vm653, %v1224, %v1226
      %v1231 = vsel %vm653, %v1222, %v1224
      %v1232 = vsel %vm653, %v1228, %v1222
      %v1233 = vmul.f32 %v1231, %v658
      %v1234 = vmul.f32 %v1230, %v659
      %v1235 = vmul.f32 %v1229, %v660
      %v1236 = vmul.f32 %v1232, %v661
      %1237 = vrot.lane.b32.xlu0 %v975, 119
      %v1238 = vpop.permute.xlu0 %1237
      %1239 = vrot.lane.b32.xlu0 %v976, 119
      %v1240 = vpop.permute.xlu0 %1239
      %1241 = vrot.lane.b32.xlu0 %v977, 119
      %v1242 = vpop.permute.xlu0 %1241
      %1243 = vrot.lane.b32.xlu0 %v978, 119
      %v1244 = vpop.permute.xlu0 %1243
      %v1245 = vsel %vm674, %v1242, %v1244
      %v1246 = vsel %vm674, %v1240, %v1242
      %v1247 = vsel %vm674, %v1238, %v1240
      %v1248 = vsel %vm674, %v1244, %v1238
      %v1249 = vmul.f32 %v1247, %v679
      %v1250 = vmul.f32 %v1246, %v680
      %v1251 = vmul.f32 %v1245, %v681
      %v1252 = vmul.f32 %v1248, %v682
      %v1253 = vmul.f32 %v991, %v687
      %v1254 = vmul.f32 %v990, %v688
      %v1255 = vmul.f32 %v989, %v689
      %v1256 = vmul.f32 %v992, %v690
      %v1257 = vmul.f32 %v1007, %v695
      %v1258 = vmul.f32 %v1006, %v696
      %v1259 = vmul.f32 %v1005, %v697
      %v1260 = vmul.f32 %v1008, %v698
      %v1261 = vmul.f32 %v1023, %v703
      %v1262 = vmul.f32 %v1022, %v704
      %v1263 = vmul.f32 %v1021, %v705
      %v1264 = vmul.f32 %v1024, %v706
      %v1265 = vmul.f32 %v1039, %v711
      %v1266 = vmul.f32 %v1038, %v712
      %v1267 = vmul.f32 %v1037, %v713
      %v1268 = vmul.f32 %v1040, %v714
      %v1269 = vmul.f32 %v1055, %v719
      %v1270 = vmul.f32 %v1054, %v720
      %v1271 = vmul.f32 %v1053, %v721
      %v1272 = vmul.f32 %v1056, %v722
      %v1273 = vmul.f32 %v1071, %v727
      %v1274 = vmul.f32 %v1070, %v728
      %v1275 = vmul.f32 %v1069, %v729
      %v1276 = vmul.f32 %v1072, %v730
      %v1277 = vmul.f32 %v1087, %v735
      %v1278 = vmul.f32 %v1086, %v736
      %v1279 = vmul.f32 %v1085, %v737
      %v1280 = vmul.f32 %v1088, %v738
      %v1281 = vmul.f32 %v1103, %v743
      %v1282 = vmul.f32 %v1102, %v744
      %v1283 = vmul.f32 %v1101, %v745
      %v1284 = vmul.f32 %v1104, %v746
      %v1285 = vmul.f32 %v1119, %v751
      %v1286 = vmul.f32 %v1118, %v752
      %v1287 = vmul.f32 %v1117, %v753
      %v1288 = vmul.f32 %v1120, %v754
      %v1289 = vld [vmem:[%s5] sm:$0xff]
      %1291 = vset.pattern.permute.xlu0 0
      %1292 = vperm.xlu0 %1291, %v1289
      %v1293 = vpop.permute.xlu0 %1292
      %v1296 = vsel %vm765, %v980, 0
      %1298 = vmatpush.msra.mxu0 %v1217
      %1299 = vmatpush.msra.mxu0 %v1201
      %1300 = vmatpush.msra.mxu0 %v975
      %1301 = vmatpush.msra.mxu0 %v1185
      %1302 = vmatpush.msra.mxu0 %v1169
      %1303 = vmatpush.msra.mxu0 %v1153
      %1304 = vmatpush.msra.mxu0 %v1137
      %1305 = vmatpush.msra.mxu0 %v1121
      %1306 = vmatpush.msra.mxu0 %v1105
      %1307 = vmatpush.msra.mxu0 %v1089
      %1308 = vmatpush.msra.mxu0 %v1073
      %1309 = vmatpush.msra.mxu0 %v1057
      %1310 = vmatpush.msra.mxu0 %v1041
      %1311 = vmatpush.msra.mxu0 %v1025
      %1312 = vmatpush.msra.mxu0 %v1009
      %1313 = vmatpush.msra.mxu0 %v993
      %1314 = vmatmul.f32.gmra.mxu0 %v979
      %v1315 = vpop.f32.mrf.mxu0
      %v1316 = vadd.f32 %v1293, %v1315
      %1317 = vdwg.mxu0
      %1318 = vmatpush.msra.mxu0 0.0
      %1319 = vmatpush.msra.mxu0 0.0
      %1320 = vmatpush.msra.mxu0 0.0
      %1321 = vmatpush.msra.mxu0 0.0
      %1322 = vmatpush.msra.mxu0 0.0
      %1323 = vmatpush.msra.mxu0 %v1285
      %1324 = vmatpush.msra.mxu0 %v1281
      %1325 = vmatpush.msra.mxu0 %v1277
      %1326 = vmatpush.msra.mxu0 %v1273
      %1327 = vmatpush.msra.mxu0 %v1269
      %1328 = vmatpush.msra.mxu0 %v1265
      %1329 = vmatpush.msra.mxu0 %v1261
      %1330 = vmatpush.msra.mxu0 %v1257
      %1331 = vmatpush.msra.mxu0 %v1253
      %1332 = vmatpush.msra.mxu0 %v1249
      %1333 = vmatpush.msra.mxu0 %v1233
      %1334 = vmatmul.f32.gmra.mxu0 %v1296
      %v1335 = vpop.f32.mrf.mxu0
      %v1336 = vadd.f32 %v1316, %v1335
      %1337 = vdwg.mxu0
      %1338 = vmatpush.msra.mxu0 %v1218
      %1339 = vmatpush.msra.mxu0 %v1202
      %1340 = vmatpush.msra.mxu0 %v976
      %1341 = vmatpush.msra.mxu0 %v1186
      %1342 = vmatpush.msra.mxu0 %v1170
      %1343 = vmatpush.msra.mxu0 %v1154
      %1344 = vmatpush.msra.mxu0 %v1138
      %1345 = vmatpush.msra.mxu0 %v1122
      %1346 = vmatpush.msra.mxu0 %v1106
      %1347 = vmatpush.msra.mxu0 %v1090
      %1348 = vmatpush.msra.mxu0 %v1074
      %1349 = vmatpush.msra.mxu0 %v1058
      %1350 = vmatpush.msra.mxu0 %v1042
      %1351 = vmatpush.msra.mxu0 %v1026
      %1352 = vmatpush.msra.mxu0 %v1010
      %1353 = vmatpush.msra.mxu0 %v994
      %1354 = vmatmul.f32.gmra.mxu0 %v979
      %v1355 = vpop.f32.mrf.mxu0
      %v1356 = vadd.f32 %v1293, %v1355
      %1357 = vdwg.mxu0
      %1358 = vmatpush.msra.mxu0 0.0
      %1359 = vmatpush.msra.mxu0 0.0
      %1360 = vmatpush.msra.mxu0 0.0
      %1361 = vmatpush.msra.mxu0 0.0
      %1362 = vmatpush.msra.mxu0 0.0
      %1363 = vmatpush.msra.mxu0 %v1286
      %1364 = vmatpush.msra.mxu0 %v1282
      %1365 = vmatpush.msra.mxu0 %v1278
      %1366 = vmatpush.msra.mxu0 %v1274
      %1367 = vmatpush.msra.mxu0 %v1270
      %1368 = vmatpush.msra.mxu0 %v1266
      %1369 = vmatpush.msra.mxu0 %v1262
      %1370 = vmatpush.msra.mxu0 %v1258
      %1371 = vmatpush.msra.mxu0 %v1254
      %1372 = vmatpush.msra.mxu0 %v1250
      %1373 = vmatpush.msra.mxu0 %v1234
      %1374 = vmatmul.f32.gmra.mxu0 %v1296
      %v1375 = vpop.f32.mrf.mxu0
      %v1376 = vadd.f32 %v1356, %v1375
      %1377 = vdwg.mxu0
      %1378 = vmatpush.msra.mxu0 %v1219
      %1379 = vmatpush.msra.mxu0 %v1203
      %1380 = vmatpush.msra.mxu0 %v977
      %1381 = vmatpush.msra.mxu0 %v1187
      %1382 = vmatpush.msra.mxu0 %v1171
      %1383 = vmatpush.msra.mxu0 %v1155
      %1384 = vmatpush.msra.mxu0 %v1139
      %1385 = vmatpush.msra.mxu0 %v1123
      %1386 = vmatpush.msra.mxu0 %v1107
      %1387 = vmatpush.msra.mxu0 %v1091
      %1388 = vmatpush.msra.mxu0 %v1075
      %1389 = vmatpush.msra.mxu0 %v1059
      %1390 = vmatpush.msra.mxu0 %v1043
      %1391 = vmatpush.msra.mxu0 %v1027
      %1392 = vmatpush.msra.mxu0 %v1011
      %1393 = vmatpush.msra.mxu0 %v995
      %1394 = vmatmul.f32.gmra.mxu0 %v979
      %v1395 = vpop.f32.mrf.mxu0
      %v1396 = vadd.f32 %v1293, %v1395
      %1397 = vdwg.mxu0
      %1398 = vmatpush.msra.mxu0 0.0
      %1399 = vmatpush.msra.mxu0 0.0
      %1400 = vmatpush.msra.mxu0 0.0
      %1401 = vmatpush.msra.mxu0 0.0
      %1402 = vmatpush.msra.mxu0 0.0
      %1403 = vmatpush.msra.mxu0 %v1287
      %1404 = vmatpush.msra.mxu0 %v1283
      %1405 = vmatpush.msra.mxu0 %v1279
      %1406 = vmatpush.msra.mxu0 %v1275
      %1407 = vmatpush.msra.mxu0 %v1271
      %1408 = vmatpush.msra.mxu0 %v1267
      %1409 = vmatpush.msra.mxu0 %v1263
      %1410 = vmatpush.msra.mxu0 %v1259
      %1411 = vmatpush.msra.mxu0 %v1255
      %1412 = vmatpush.msra.mxu0 %v1251
      %1413 = vmatpush.msra.mxu0 %v1235
      %1414 = vmatmul.f32.gmra.mxu0 %v1296
      %v1415 = vpop.f32.mrf.mxu0
      %v1416 = vadd.f32 %v1396, %v1415
      %1417 = vdwg.mxu0
      %1418 = vmatpush.msra.mxu0 %v1220
      %1419 = vmatpush.msra.mxu0 %v1204
      %1420 = vmatpush.msra.mxu0 %v978
      %1421 = vmatpush.msra.mxu0 %v1188
      %1422 = vmatpush.msra.mxu0 %v1172
      %1423 = vmatpush.msra.mxu0 %v1156
      %1424 = vmatpush.msra.mxu0 %v1140
      %1425 = vmatpush.msra.mxu0 %v1124
      %1426 = vmatpush.msra.mxu0 %v1108
      %1427 = vmatpush.msra.mxu0 %v1092
      %1428 = vmatpush.msra.mxu0 %v1076
      %1429 = vmatpush.msra.mxu0 %v1060
      %1430 = vmatpush.msra.mxu0 %v1044
      %1431 = vmatpush.msra.mxu0 %v1028
      %1432 = vmatpush.msra.mxu0 %v1012
      %1433 = vmatpush.msra.mxu0 %v996
      %1434 = vmatmul.f32.gmra.mxu0 %v979
      %v1435 = vpop.f32.mrf.mxu0
      %v1436 = vadd.f32 %v1293, %v1435
      %1437 = vdwg.mxu0
      %1438 = vmatpush.msra.mxu0 0.0
      %1439 = vmatpush.msra.mxu0 0.0
      %1440 = vmatpush.msra.mxu0 0.0
      %1441 = vmatpush.msra.mxu0 0.0
      %1442 = vmatpush.msra.mxu0 0.0
      %1443 = vmatpush.msra.mxu0 %v1288
      %1444 = vmatpush.msra.mxu0 %v1284
      %1445 = vmatpush.msra.mxu0 %v1280
      %1446 = vmatpush.msra.mxu0 %v1276
      %1447 = vmatpush.msra.mxu0 %v1272
      %1448 = vmatpush.msra.mxu0 %v1268
      %1449 = vmatpush.msra.mxu0 %v1264
      %1450 = vmatpush.msra.mxu0 %v1260
      %1451 = vmatpush.msra.mxu0 %v1256
      %1452 = vmatpush.msra.mxu0 %v1252
      %1453 = vmatpush.msra.mxu0 %v1236
      %1454 = vmatmul.f32.gmra.mxu0 %v1296
      %v1455 = vpop.f32.mrf.mxu0
      %v1456 = vadd.f32 %v1436, %v1455
      %1457 = vdwg.mxu0
      %v1458 = vadd.f32 %v1336, %v1376
      %v1459 = vadd.f32 %v1458, %v1416
      %v1460 = vadd.f32 %v1459, %v1456
      %1461 = vadd.xlane.f32.xlu0 %v1460
      %v1462 = vpop.xlane.xlu0 %1461
      %v1463 = vmul.f32 %v1462, 0.001953125
      %v1464 = vmul.f32 %v1336, %v1336
      %v1465 = vmul.f32 %v1376, %v1376
      %v1466 = vmul.f32 %v1416, %v1416
      %v1467 = vmul.f32 %v1456, %v1456
      %v1468 = vadd.f32 %v1464, %v1465
      %v1469 = vadd.f32 %v1468, %v1466
      %v1470 = vadd.f32 %v1469, %v1467
      %1471 = vadd.xlane.f32.xlu0 %v1470
      %v1472 = vpop.xlane.xlu0 %1471
      %v1473 = vmul.f32 %v1472, 0.001953125
      %v1474 = vmul.f32 %v1463, %v1463
      %v1475 = vsub.f32 %v1473, %v1474
      %v1476 = vsub.f32 %v1336, %v1463
      %v1477 = vsub.f32 %v1376, %v1463
      %v1478 = vsub.f32 %v1416, %v1463
      %v1479 = vsub.f32 %v1456, %v1463
      %v1480 = vmax.f32 %v1475, 0.0
      %v1481 = vadd.f32 %v1480, 1e-05
      %v1482 = vrsqrt.pop %v1481
      %v1483 = vmul.f32 %v1482, %v1481
      %v1484 = vmul.f32 %v1483, %v1482
      %v1485 = vmul.f32 0.5, %v1484
      %v1486 = vsub.f32 1.5, %v1485
      %v1487 = vmul.f32 %v1482, %v1486
      %vm1488 = vweird.f32 %v1481
      %vm1489 = vweird.f32 %v1482
      %vm1490 = vmor %vm1488, %vm1489
      %v1491 = vsel %vm1490, %v1482, %v1487
      %v1492 = vmul.f32 %v1476, %v1491
      %v1493 = vmul.f32 %v1477, %v1491
      %v1494 = vmul.f32 %v1478, %v1491
      %v1495 = vmul.f32 %v1479, %v1491
      %v1496 = vld [vmem:[%s6] sm:$0xff]
      %v1497 = vld [vmem:[%s7] sm:$0xff]
      %1499 = vset.pattern.permute.xlu0 0
      %1500 = vperm.xlu0 %1499, %v1497
      %v1501 = vpop.permute.xlu0 %1500
      %vm1503 = vcmask 64512
      %v1505 = vsel %vm1503, %v1496, 0
      %1507 = vmatpush.msra.mxu0 0.0
      %1508 = vmatpush.msra.mxu0 0.0
      %1509 = vmatpush.msra.mxu0 0.0
      %1510 = vmatpush.msra.mxu0 0.0
      %1511 = vmatpush.msra.mxu0 0.0
      %1512 = vmatpush.msra.mxu0 0.0
      %1513 = vmatpush.msra.mxu0 0.0
      %1514 = vmatpush.msra.mxu0 0.0
      %1515 = vmatpush.msra.mxu0 0.0
      %1516 = vmatpush.msra.mxu0 0.0
      %1517 = vmatpush.msra.mxu0 0.0
      %1518 = vmatpush.msra.mxu0 0.0
      %1519 = vmatpush.msra.mxu0 0.0
      %1520 = vmatpush.msra.mxu0 0.0
      %1521 = vmatpush.msra.mxu0 0.0
      %1522 = vmatpush.msra.mxu0 %v306
      %1523 = vmatmul.f32.gmra.mxu0 %v1505
      %v1524 = vpop.f32.mrf.mxu0
      %v1525 = vadd.f32 %v1501, %v1524
      %1526 = vdwg.mxu0
      %1527 = vmatpush.msra.mxu0 0.0
      %1528 = vmatpush.msra.mxu0 0.0
      %1529 = vmatpush.msra.mxu0 0.0
      %1530 = vmatpush.msra.mxu0 0.0
      %1531 = vmatpush.msra.mxu0 0.0
      %1532 = vmatpush.msra.mxu0 0.0
      %1533 = vmatpush.msra.mxu0 0.0
      %1534 = vmatpush.msra.mxu0 0.0
      %1535 = vmatpush.msra.mxu0 0.0
      %1536 = vmatpush.msra.mxu0 0.0
      %1537 = vmatpush.msra.mxu0 0.0
      %1538 = vmatpush.msra.mxu0 0.0
      %1539 = vmatpush.msra.mxu0 0.0
      %1540 = vmatpush.msra.mxu0 0.0
      %1541 = vmatpush.msra.mxu0 0.0
      %1542 = vmatpush.msra.mxu0 %v307
      %1543 = vmatmul.f32.gmra.mxu0 %v1505
      %v1544 = vpop.f32.mrf.mxu0
      %v1545 = vadd.f32 %v1501, %v1544
      %1546 = vdwg.mxu0
      %1547 = vmatpush.msra.mxu0 0.0
      %1548 = vmatpush.msra.mxu0 0.0
      %1549 = vmatpush.msra.mxu0 0.0
      %1550 = vmatpush.msra.mxu0 0.0
      %1551 = vmatpush.msra.mxu0 0.0
      %1552 = vmatpush.msra.mxu0 0.0
      %1553 = vmatpush.msra.mxu0 0.0
      %1554 = vmatpush.msra.mxu0 0.0
      %1555 = vmatpush.msra.mxu0 0.0
      %1556 = vmatpush.msra.mxu0 0.0
      %1557 = vmatpush.msra.mxu0 0.0
      %1558 = vmatpush.msra.mxu0 0.0
      %1559 = vmatpush.msra.mxu0 0.0
      %1560 = vmatpush.msra.mxu0 0.0
      %1561 = vmatpush.msra.mxu0 0.0
      %1562 = vmatpush.msra.mxu0 %v308
      %1563 = vmatmul.f32.gmra.mxu0 %v1505
      %v1564 = vpop.f32.mrf.mxu0
      %v1565 = vadd.f32 %v1501, %v1564
      %1566 = vdwg.mxu0
      %1567 = vmatpush.msra.mxu0 0.0
      %1568 = vmatpush.msra.mxu0 0.0
      %1569 = vmatpush.msra.mxu0 0.0
      %1570 = vmatpush.msra.mxu0 0.0
      %1571 = vmatpush.msra.mxu0 0.0
      %1572 = vmatpush.msra.mxu0 0.0
      %1573 = vmatpush.msra.mxu0 0.0
      %1574 = vmatpush.msra.mxu0 0.0
      %1575 = vmatpush.msra.mxu0 0.0
      %1576 = vmatpush.msra.mxu0 0.0
      %1577 = vmatpush.msra.mxu0 0.0
      %1578 = vmatpush.msra.mxu0 0.0
      %1579 = vmatpush.msra.mxu0 0.0
      %1580 = vmatpush.msra.mxu0 0.0
      %1581 = vmatpush.msra.mxu0 0.0
      %1582 = vmatpush.msra.mxu0 %v309
      %1583 = vmatmul.f32.gmra.mxu0 %v1505
      %v1584 = vpop.f32.mrf.mxu0
      %v1585 = vadd.f32 %v1501, %v1584
      %1586 = vdwg.mxu0
      %v1587 = vadd.f32 %v1492, %v1525
      %v1588 = vadd.f32 %v1493, %v1545
      %v1589 = vadd.f32 %v1494, %v1565
      %v1590 = vadd.f32 %v1495, %v1585
      %vm1591 = vcmp.ge.f32.partialorder %v1587, 0.0
      %vm1592 = vcmp.ge.f32.partialorder %v1588, 0.0
      %vm1593 = vcmp.ge.f32.partialorder %v1589, 0.0
      %vm1594 = vcmp.ge.f32.partialorder %v1590, 0.0
      %v1595 = vmul.f32 %v1587, 0.01
      %v1596 = vmul.f32 %v1588, 0.01
      %v1597 = vmul.f32 %v1589, 0.01
      %v1598 = vmul.f32 %v1590, 0.01
      %v1599 = vsel %vm1591, %v1587, %v1595
      %v1600 = vsel %vm1592, %v1588, %v1596
      %v1601 = vsel %vm1593, %v1589, %v1597
      %v1602 = vsel %vm1594, %v1590, %v1598
      %1603 = vst [vmem:[%s305] sm:$0xff] %v1599
      %1604 = vst [vmem:[%s305 + $0x8] sm:$0xff] %v1600
      %1605 = vst [vmem:[%s305 + $0x10] sm:$0xff] %v1601
      %1606 = vst [vmem:[%s305 + $0x18] sm:$0xff] %v1602
      %p1607 = scmp.lt.s32.totalorder %s19, 1
      %s1608 = scalar_select %p1607, %s19, 1
      %s1609 = smul.addr %s1608, 4
      %s1610 = smul.addr %s1609, 8
      %s1611 = scalar_lea.vmem %s8, %s1610
      // Predicated region
      $region53: #{res_conv_block.1} parent=51 // pred_check
        %p1612 = pneg %p210
      $region54: #{res_conv_block.1} parent=51 // pred_check_branch
        %1614 = sbr.rel (%p1612) target = $region56
      $region55: #{res_conv_block.1} parent=51 // pred_region
        _
      $region56: #{res_conv_block.1} parent=51 // pred_fallthru
        _
    $region52: #{res_conv_block.1} parent=5 // pred_fallthru
      _
    %p1615 = scmp.le.s32.totalorder 2, %s14
    // Predicated region
    $region57: #{res_conv_block.1} parent=5 // pred_check
      %p1616 = pneg %p1615
    $region58: #{res_conv_block.1} parent=5 // pred_check_branch
      %1618 = sbr.rel (%p1616) target = $region60
    $region59: #{res_conv_block.1} parent=5 // pred_region
      %s1619 = ssub.s32 %s14, 2
      // Predicated region
      $region61: #{res_conv_block.1} parent=59 // pred_check
        %p1620 = pneg %p216
      $region62: #{res_conv_block.1} parent=59 // pred_check_branch
        %1622 = sbr.rel (%p1620) target = $region64
      $region63: #{res_conv_block.1} parent=59 // pred_region
        %p1623 = scmp.lt.s32.totalorder %s20, 1
        %s1624 = scalar_select %p1623, %s20, 1
        %s1625 = smul.addr %s1624, 4
        %s1626 = smul.addr %s1625, 8
        %s1627 = scalar_lea.vmem %s8, %s1626
      $region64: #{res_conv_block.1} parent=59 // pred_fallthru
        _
    $region60: #{res_conv_block.1} parent=5 // pred_fallthru
      _
  $region6: #{res_conv_block.1} parent=0 // loop_footer
    %s18 = sadd.s32 1, %s14
  $region7: #{res_conv_block.1} parent=0 // loop_footer_branch
    %13 = sbr.rel target = $region3
  $region8: #{res_conv_block.1} parent=0 // loop_exit
    _

</llo_original>
